<compile_context>
chip_gen: v5e
topology: v5e:2x2
jax: 0.10.0
libtpu: 0.0.40
codegen_flags: <defaults>
</compile_context>

<pallas_src>
import functools

import jax
import jax.numpy as jnp
from jax.experimental import pallas as pl
from jax.experimental.pallas import tpu as pltpu


def _attention_kernel(x_ref, wq_ref, wk_ref, wv_ref, wo_ref, mask_ref, o_ref,
                      *, heads: int, scale: float):
    """One batch element per grid step: full multi-head attention."""
    x = x_ref[0]                                              # [N, dim]
    acc = jnp.zeros(o_ref.shape[1:], jnp.float32)             # [N, dim]
    # Static unroll over heads: each iteration is a chain of small 2-D MXU
    # matmuls; no activation reshapes/transposes inside the kernel.
    for h in range(heads):
        q = jnp.dot(x, wq_ref[h], preferred_element_type=jnp.float32)    # [N, Dh]
        k = jnp.dot(x, wk_ref[h], preferred_element_type=jnp.float32)    # [N, Dh]
        v = jnp.dot(x, wv_ref[h], preferred_element_type=jnp.float32)    # [N, Dh]
        # q @ k^T via dot_general (contract last dims) - no materialized transpose.
        dots = jax.lax.dot_general(
            q, k, (((1,), (1,)), ((), ())),
            preferred_element_type=jnp.float32) * scale                  # [N, N]
        dots = dots - jnp.max(dots, axis=-1, keepdims=True)
        p = jnp.exp(dots)
        attn = p / jnp.sum(p, axis=-1, keepdims=True)
        attn = attn * mask_ref[...]           # PyTorch: attn * mask[0] (post-softmax)
        out_h = jnp.dot(attn, v, preferred_element_type=jnp.float32)     # [N, Dh]
        acc = acc + jnp.dot(out_h, wo_ref[h],
                            preferred_element_type=jnp.float32)          # [N, dim]
    o_ref[0] = acc.astype(o_ref.dtype)


def attention_forward(x, w_qkv, w_out, mask, *, heads: int, dim_head: int):
    """x: [B, N, dim]; w_qkv: [dim, 3*H*Dh]; w_out: [H*Dh, dim]; mask: [B, N, N]."""
    B, N, dim = x.shape
    inner = heads * dim_head
    assert w_qkv.shape == (dim, 3 * inner)
    assert w_out.shape == (inner, dim)
    scale = dim_head ** -0.5

    # ---- one-time layout plumbing (wrapper, not per grid step) ----
    wq, wk, wv = jnp.split(w_qkv, 3, axis=-1)                  # each [dim, inner]
    def to_head_slab(w):                                       # -> [H, dim, Dh]
        return jnp.transpose(w.reshape(dim, heads, dim_head), (1, 0, 2))
    wq, wk, wv = to_head_slab(wq), to_head_slab(wk), to_head_slab(wv)
    wo = w_out.reshape(heads, dim_head, dim)                   # [H, Dh, dim]
    mask0 = mask[0].astype(x.dtype)                            # [N, N]

    kernel = functools.partial(_attention_kernel, heads=heads, scale=scale)

    return pl.pallas_call(
        kernel,
        out_shape=jax.ShapeDtypeStruct((B, N, dim), x.dtype),
        grid_spec=pltpu.PrefetchScalarGridSpec(
            num_scalar_prefetch=0,
            grid=(B,),
            in_specs=[
                pl.BlockSpec((1, N, dim), lambda b: (b, 0, 0)),             # x
                pl.BlockSpec((heads, dim, dim_head), lambda b: (0, 0, 0)),  # Wq
                pl.BlockSpec((heads, dim, dim_head), lambda b: (0, 0, 0)),  # Wk
                pl.BlockSpec((heads, dim, dim_head), lambda b: (0, 0, 0)),  # Wv
                pl.BlockSpec((heads, dim_head, dim), lambda b: (0, 0, 0)),  # Wout
                pl.BlockSpec((N, N), lambda b: (0, 0)),                     # mask[0]
            ],
            out_specs=pl.BlockSpec((1, N, dim), lambda b: (b, 0, 0)),
        ),
        compiler_params=pltpu.CompilerParams(
            dimension_semantics=("parallel",),
        ),
    )(x, wq, wk, wv, wo, mask0)


def attention_ref(x, w_qkv, w_out, mask, *, heads: int, dim_head: int):
    """Pure-JAX reference mirroring the PyTorch forward."""
    B, N, dim = x.shape
    inner = heads * dim_head
    scale = dim_head ** -0.5
    qkv = x @ w_qkv                                            # [B, N, 3*inner]
    q, k, v = jnp.split(qkv, 3, axis=-1)
    def to_heads(t):                                           # 'b n (h d) -> b h n d'
        return jnp.transpose(t.reshape(B, N, heads, dim_head), (0, 2, 1, 3))
    q, k, v = to_heads(q), to_heads(k), to_heads(v)
    dots = jnp.einsum('bhnd,bhmd->bhnm', q, k) * scale
    attn = jax.nn.softmax(dots, axis=-1)
    attn = attn * mask[0]
    out = jnp.einsum('bhnm,bhmd->bhnd', attn, v)
    out = jnp.transpose(out, (0, 2, 1, 3)).reshape(B, N, inner)  # 'b h n d -> b n (h d)'
    return out @ w_out


if __name__ == "__main__":
    B, N, dim = 2, 8, 128
    heads, dim_head = 8, 64
    inner = heads * dim_head

    key = jax.random.PRNGKey(0)
    kx, kq, ko = jax.random.split(key, 3)
    x = jax.random.normal(kx, (B, N, dim), dtype=jnp.float32)
    w_qkv = jax.random.normal(kq, (dim, 3 * inner), dtype=jnp.float32) * 0.05
    w_out = jax.random.normal(ko, (inner, dim), dtype=jnp.float32) * 0.05
    # Deterministic, non-trivial mask; the forward only uses mask[0].
    mask = jnp.broadcast_to(jnp.tril(jnp.ones((N, N), jnp.float32)), (B, N, N))

    out = attention_forward(x, w_qkv, w_out, mask, heads=heads, dim_head=dim_head)
    out = jax.block_until_ready(out)

    ref = attention_ref(x, w_qkv, w_out, mask, heads=heads, dim_head=dim_head)
    assert out.shape == (B, N, dim)
    assert jnp.allclose(out, ref, atol=2e-2, rtol=2e-2), "mismatch vs reference"

    print("KERNEL_OK")
</pallas_src>

<mosaic_0001>
module attributes {stable_mosaic.version = 11 : i64} {
  func.func @_attention_kernel(%arg0: i32, %arg1: memref<1x8x128xf32, #tpu.memory_space<vmem>>, %arg2: memref<8x128x64xf32, #tpu.memory_space<vmem>>, %arg3: memref<8x128x64xf32, #tpu.memory_space<vmem>>, %arg4: memref<8x128x64xf32, #tpu.memory_space<vmem>>, %arg5: memref<8x64x128xf32, #tpu.memory_space<vmem>>, %arg6: memref<8x8xf32, #tpu.memory_space<vmem>>, %arg7: memref<1x8x128xf32, #tpu.memory_space<vmem>>) attributes {dimension_semantics = [#tpu.dimension_semantics<parallel>], iteration_bounds = array<i64: 2>, scalar_prefetch = 0 : i64, scratch_operands = 0 : i64, tpu.core_type = #tpu.core_type<tc>, window_params = [{transform_indices = @transform_0, window_bounds = array<i64: 1, 8, 128>}, {pipeline_mode = #tpu.pipeline_mode<synchronous>, transform_indices = @transform_1, window_bounds = array<i64: 8, 128, 64>}, {pipeline_mode = #tpu.pipeline_mode<synchronous>, transform_indices = @transform_2, window_bounds = array<i64: 8, 128, 64>}, {pipeline_mode = #tpu.pipeline_mode<synchronous>, transform_indices = @transform_3, window_bounds = array<i64: 8, 128, 64>}, {pipeline_mode = #tpu.pipeline_mode<synchronous>, transform_indices = @transform_4, window_bounds = array<i64: 8, 64, 128>}, {pipeline_mode = #tpu.pipeline_mode<synchronous>, transform_indices = @transform_5, window_bounds = array<i64: 8, 8>}, {transform_indices = @transform_6, window_bounds = array<i64: 1, 8, 128>}]} {
    %c0 = arith.constant 0 : index
    %c0_0 = arith.constant 0 : index
    %c0_1 = arith.constant 0 : index
    %0 = vector.load %arg1[%c0, %c0_0, %c0_1] : memref<1x8x128xf32, #tpu.memory_space<vmem>>, vector<1x8x128xf32>
    %1 = vector.shape_cast %0 : vector<1x8x128xf32> to vector<8x128xf32>
    %cst = arith.constant 0.000000e+00 : f32
    %2 = vector.broadcast %cst : f32 to vector<8x128xf32>
    %c0_2 = arith.constant 0 : index
    %c0_3 = arith.constant 0 : index
    %c0_4 = arith.constant 0 : index
    %3 = vector.load %arg2[%c0_2, %c0_3, %c0_4] : memref<8x128x64xf32, #tpu.memory_space<vmem>>, vector<1x128x64xf32>
    %4 = vector.shape_cast %3 : vector<1x128x64xf32> to vector<128x64xf32>
    %cst_5 = arith.constant dense<0.000000e+00> : vector<8x64xf32>
    %5 = tpu.matmul %1, %4, %cst_5 {dimension_numbers = #tpu.dot_dimension_numbers<[1], [0], [0], [1], [0, 0, 1, 1], [], []>} : vector<8x128xf32>, vector<128x64xf32>, vector<8x64xf32> -> vector<8x64xf32>
    %c0_6 = arith.constant 0 : index
    %c0_7 = arith.constant 0 : index
    %c0_8 = arith.constant 0 : index
    %6 = vector.load %arg3[%c0_6, %c0_7, %c0_8] : memref<8x128x64xf32, #tpu.memory_space<vmem>>, vector<1x128x64xf32>
    %7 = vector.shape_cast %6 : vector<1x128x64xf32> to vector<128x64xf32>
    %cst_9 = arith.constant dense<0.000000e+00> : vector<8x64xf32>
    %8 = tpu.matmul %1, %7, %cst_9 {dimension_numbers = #tpu.dot_dimension_numbers<[1], [0], [0], [1], [0, 0, 1, 1], [], []>} : vector<8x128xf32>, vector<128x64xf32>, vector<8x64xf32> -> vector<8x64xf32>
    %c0_10 = arith.constant 0 : index
    %c0_11 = arith.constant 0 : index
    %c0_12 = arith.constant 0 : index
    %9 = vector.load %arg4[%c0_10, %c0_11, %c0_12] : memref<8x128x64xf32, #tpu.memory_space<vmem>>, vector<1x128x64xf32>
    %10 = vector.shape_cast %9 : vector<1x128x64xf32> to vector<128x64xf32>
    %cst_13 = arith.constant dense<0.000000e+00> : vector<8x64xf32>
    %11 = tpu.matmul %1, %10, %cst_13 {dimension_numbers = #tpu.dot_dimension_numbers<[1], [0], [0], [1], [0, 0, 1, 1], [], []>} : vector<8x128xf32>, vector<128x64xf32>, vector<8x64xf32> -> vector<8x64xf32>
    %cst_14 = arith.constant dense<0.000000e+00> : vector<8x8xf32>
    %12 = tpu.matmul %5, %8, %cst_14 {dimension_numbers = #tpu.dot_dimension_numbers<[1], [1], [0], [0], [0, 0, 1, 0], [], []>} : vector<8x64xf32>, vector<8x64xf32>, vector<8x8xf32> -> vector<8x8xf32>
    %cst_15 = arith.constant 1.250000e-01 : f32
    %13 = vector.broadcast %cst_15 : f32 to vector<8x8xf32>
    %14 = arith.mulf %12, %13 : vector<8x8xf32>
    %cst_16 = arith.constant dense<0xFF800000> : vector<8xf32>
    %15 = vector.multi_reduction <maximumf>, %14, %cst_16 [1] : vector<8x8xf32> to vector<8xf32>
    %16 = vector.shape_cast %15 : vector<8xf32> to vector<8x1xf32>
    %17 = vector.broadcast %16 : vector<8x1xf32> to vector<8x8xf32>
    %18 = arith.subf %14, %17 : vector<8x8xf32>
    %19 = math.exp %18 : vector<8x8xf32>
    %cst_17 = arith.constant dense<0.000000e+00> : vector<8xf32>
    %20 = vector.multi_reduction <add>, %19, %cst_17 [1] : vector<8x8xf32> to vector<8xf32>
    %21 = vector.shape_cast %20 : vector<8xf32> to vector<8x1xf32>
    %22 = vector.broadcast %21 : vector<8x1xf32> to vector<8x8xf32>
    %23 = arith.divf %19, %22 : vector<8x8xf32>
    %c0_18 = arith.constant 0 : index
    %c0_19 = arith.constant 0 : index
    %24 = vector.load %arg6[%c0_18, %c0_19] : memref<8x8xf32, #tpu.memory_space<vmem>>, vector<8x8xf32>
    %25 = arith.mulf %23, %24 : vector<8x8xf32>
    %cst_20 = arith.constant dense<0.000000e+00> : vector<8x64xf32>
    %26 = tpu.matmul %25, %11, %cst_20 {dimension_numbers = #tpu.dot_dimension_numbers<[1], [0], [0], [1], [0, 0, 1, 1], [], []>} : vector<8x8xf32>, vector<8x64xf32>, vector<8x64xf32> -> vector<8x64xf32>
    %c0_21 = arith.constant 0 : index
    %c0_22 = arith.constant 0 : index
    %c0_23 = arith.constant 0 : index
    %27 = vector.load %arg5[%c0_21, %c0_22, %c0_23] : memref<8x64x128xf32, #tpu.memory_space<vmem>>, vector<1x64x128xf32>
    %28 = vector.shape_cast %27 : vector<1x64x128xf32> to vector<64x128xf32>
    %cst_24 = arith.constant dense<0.000000e+00> : vector<8x128xf32>
    %29 = tpu.matmul %26, %28, %cst_24 {dimension_numbers = #tpu.dot_dimension_numbers<[1], [0], [0], [1], [0, 0, 1, 1], [], []>} : vector<8x64xf32>, vector<64x128xf32>, vector<8x128xf32> -> vector<8x128xf32>
    %30 = arith.addf %2, %29 : vector<8x128xf32>
    %c1 = arith.constant 1 : index
    %c0_25 = arith.constant 0 : index
    %c0_26 = arith.constant 0 : index
    %31 = vector.load %arg2[%c1, %c0_25, %c0_26] : memref<8x128x64xf32, #tpu.memory_space<vmem>>, vector<1x128x64xf32>
    %32 = vector.shape_cast %31 : vector<1x128x64xf32> to vector<128x64xf32>
    %cst_27 = arith.constant dense<0.000000e+00> : vector<8x64xf32>
    %33 = tpu.matmul %1, %32, %cst_27 {dimension_numbers = #tpu.dot_dimension_numbers<[1], [0], [0], [1], [0, 0, 1, 1], [], []>} : vector<8x128xf32>, vector<128x64xf32>, vector<8x64xf32> -> vector<8x64xf32>
    %c1_28 = arith.constant 1 : index
    %c0_29 = arith.constant 0 : index
    %c0_30 = arith.constant 0 : index
    %34 = vector.load %arg3[%c1_28, %c0_29, %c0_30] : memref<8x128x64xf32, #tpu.memory_space<vmem>>, vector<1x128x64xf32>
    %35 = vector.shape_cast %34 : vector<1x128x64xf32> to vector<128x64xf32>
    %cst_31 = arith.constant dense<0.000000e+00> : vector<8x64xf32>
    %36 = tpu.matmul %1, %35, %cst_31 {dimension_numbers = #tpu.dot_dimension_numbers<[1], [0], [0], [1], [0, 0, 1, 1], [], []>} : vector<8x128xf32>, vector<128x64xf32>, vector<8x64xf32> -> vector<8x64xf32>
    %c1_32 = arith.constant 1 : index
    %c0_33 = arith.constant 0 : index
    %c0_34 = arith.constant 0 : index
    %37 = vector.load %arg4[%c1_32, %c0_33, %c0_34] : memref<8x128x64xf32, #tpu.memory_space<vmem>>, vector<1x128x64xf32>
    %38 = vector.shape_cast %37 : vector<1x128x64xf32> to vector<128x64xf32>
    %cst_35 = arith.constant dense<0.000000e+00> : vector<8x64xf32>
    %39 = tpu.matmul %1, %38, %cst_35 {dimension_numbers = #tpu.dot_dimension_numbers<[1], [0], [0], [1], [0, 0, 1, 1], [], []>} : vector<8x128xf32>, vector<128x64xf32>, vector<8x64xf32> -> vector<8x64xf32>
    %cst_36 = arith.constant dense<0.000000e+00> : vector<8x8xf32>
    %40 = tpu.matmul %33, %36, %cst_36 {dimension_numbers = #tpu.dot_dimension_numbers<[1], [1], [0], [0], [0, 0, 1, 0], [], []>} : vector<8x64xf32>, vector<8x64xf32>, vector<8x8xf32> -> vector<8x8xf32>
    %cst_37 = arith.constant 1.250000e-01 : f32
    %41 = vector.broadcast %cst_37 : f32 to vector<8x8xf32>
    %42 = arith.mulf %40, %41 : vector<8x8xf32>
    %cst_38 = arith.constant dense<0xFF800000> : vector<8xf32>
    %43 = vector.multi_reduction <maximumf>, %42, %cst_38 [1] : vector<8x8xf32> to vector<8xf32>
    %44 = vector.shape_cast %43 : vector<8xf32> to vector<8x1xf32>
    %45 = vector.broadcast %44 : vector<8x1xf32> to vector<8x8xf32>
    %46 = arith.subf %42, %45 : vector<8x8xf32>
    %47 = math.exp %46 : vector<8x8xf32>
    %cst_39 = arith.constant dense<0.000000e+00> : vector<8xf32>
    %48 = vector.multi_reduction <add>, %47, %cst_39 [1] : vector<8x8xf32> to vector<8xf32>
    %49 = vector.shape_cast %48 : vector<8xf32> to vector<8x1xf32>
    %50 = vector.broadcast %49 : vector<8x1xf32> to vector<8x8xf32>
    %51 = arith.divf %47, %50 : vector<8x8xf32>
    %c0_40 = arith.constant 0 : index
    %c0_41 = arith.constant 0 : index
    %52 = vector.load %arg6[%c0_40, %c0_41] : memref<8x8xf32, #tpu.memory_space<vmem>>, vector<8x8xf32>
    %53 = arith.mulf %51, %52 : vector<8x8xf32>
    %cst_42 = arith.constant dense<0.000000e+00> : vector<8x64xf32>
    %54 = tpu.matmul %53, %39, %cst_42 {dimension_numbers = #tpu.dot_dimension_numbers<[1], [0], [0], [1], [0, 0, 1, 1], [], []>} : vector<8x8xf32>, vector<8x64xf32>, vector<8x64xf32> -> vector<8x64xf32>
    %c1_43 = arith.constant 1 : index
    %c0_44 = arith.constant 0 : index
    %c0_45 = arith.constant 0 : index
    %55 = vector.load %arg5[%c1_43, %c0_44, %c0_45] : memref<8x64x128xf32, #tpu.memory_space<vmem>>, vector<1x64x128xf32>
    %56 = vector.shape_cast %55 : vector<1x64x128xf32> to vector<64x128xf32>
    %cst_46 = arith.constant dense<0.000000e+00> : vector<8x128xf32>
    %57 = tpu.matmul %54, %56, %cst_46 {dimension_numbers = #tpu.dot_dimension_numbers<[1], [0], [0], [1], [0, 0, 1, 1], [], []>} : vector<8x64xf32>, vector<64x128xf32>, vector<8x128xf32> -> vector<8x128xf32>
    %58 = arith.addf %30, %57 : vector<8x128xf32>
    %c2 = arith.constant 2 : index
    %c0_47 = arith.constant 0 : index
    %c0_48 = arith.constant 0 : index
    %59 = vector.load %arg2[%c2, %c0_47, %c0_48] : memref<8x128x64xf32, #tpu.memory_space<vmem>>, vector<1x128x64xf32>
    %60 = vector.shape_cast %59 : vector<1x128x64xf32> to vector<128x64xf32>
    %cst_49 = arith.constant dense<0.000000e+00> : vector<8x64xf32>
    %61 = tpu.matmul %1, %60, %cst_49 {dimension_numbers = #tpu.dot_dimension_numbers<[1], [0], [0], [1], [0, 0, 1, 1], [], []>} : vector<8x128xf32>, vector<128x64xf32>, vector<8x64xf32> -> vector<8x64xf32>
    %c2_50 = arith.constant 2 : index
    %c0_51 = arith.constant 0 : index
    %c0_52 = arith.constant 0 : index
    %62 = vector.load %arg3[%c2_50, %c0_51, %c0_52] : memref<8x128x64xf32, #tpu.memory_space<vmem>>, vector<1x128x64xf32>
    %63 = vector.shape_cast %62 : vector<1x128x64xf32> to vector<128x64xf32>
    %cst_53 = arith.constant dense<0.000000e+00> : vector<8x64xf32>
    %64 = tpu.matmul %1, %63, %cst_53 {dimension_numbers = #tpu.dot_dimension_numbers<[1], [0], [0], [1], [0, 0, 1, 1], [], []>} : vector<8x128xf32>, vector<128x64xf32>, vector<8x64xf32> -> vector<8x64xf32>
    %c2_54 = arith.constant 2 : index
    %c0_55 = arith.constant 0 : index
    %c0_56 = arith.constant 0 : index
    %65 = vector.load %arg4[%c2_54, %c0_55, %c0_56] : memref<8x128x64xf32, #tpu.memory_space<vmem>>, vector<1x128x64xf32>
    %66 = vector.shape_cast %65 : vector<1x128x64xf32> to vector<128x64xf32>
    %cst_57 = arith.constant dense<0.000000e+00> : vector<8x64xf32>
    %67 = tpu.matmul %1, %66, %cst_57 {dimension_numbers = #tpu.dot_dimension_numbers<[1], [0], [0], [1], [0, 0, 1, 1], [], []>} : vector<8x128xf32>, vector<128x64xf32>, vector<8x64xf32> -> vector<8x64xf32>
    %cst_58 = arith.constant dense<0.000000e+00> : vector<8x8xf32>
    %68 = tpu.matmul %61, %64, %cst_58 {dimension_numbers = #tpu.dot_dimension_numbers<[1], [1], [0], [0], [0, 0, 1, 0], [], []>} : vector<8x64xf32>, vector<8x64xf32>, vector<8x8xf32> -> vector<8x8xf32>
    %cst_59 = arith.constant 1.250000e-01 : f32
    %69 = vector.broadcast %cst_59 : f32 to vector<8x8xf32>
    %70 = arith.mulf %68, %69 : vector<8x8xf32>
    %cst_60 = arith.constant dense<0xFF800000> : vector<8xf32>
    %71 = vector.multi_reduction <maximumf>, %70, %cst_60 [1] : vector<8x8xf32> to vector<8xf32>
    %72 = vector.shape_cast %71 : vector<8xf32> to vector<8x1xf32>
    %73 = vector.broadcast %72 : vector<8x1xf32> to vector<8x8xf32>
    %74 = arith.subf %70, %73 : vector<8x8xf32>
    %75 = math.exp %74 : vector<8x8xf32>
    %cst_61 = arith.constant dense<0.000000e+00> : vector<8xf32>
    %76 = vector.multi_reduction <add>, %75, %cst_61 [1] : vector<8x8xf32> to vector<8xf32>
    %77 = vector.shape_cast %76 : vector<8xf32> to vector<8x1xf32>
    %78 = vector.broadcast %77 : vector<8x1xf32> to vector<8x8xf32>
    %79 = arith.divf %75, %78 : vector<8x8xf32>
    %c0_62 = arith.constant 0 : index
    %c0_63 = arith.constant 0 : index
    %80 = vector.load %arg6[%c0_62, %c0_63] : memref<8x8xf32, #tpu.memory_space<vmem>>, vector<8x8xf32>
    %81 = arith.mulf %79, %80 : vector<8x8xf32>
    %cst_64 = arith.constant dense<0.000000e+00> : vector<8x64xf32>
    %82 = tpu.matmul %81, %67, %cst_64 {dimension_numbers = #tpu.dot_dimension_numbers<[1], [0], [0], [1], [0, 0, 1, 1], [], []>} : vector<8x8xf32>, vector<8x64xf32>, vector<8x64xf32> -> vector<8x64xf32>
    %c2_65 = arith.constant 2 : index
    %c0_66 = arith.constant 0 : index
    %c0_67 = arith.constant 0 : index
    %83 = vector.load %arg5[%c2_65, %c0_66, %c0_67] : memref<8x64x128xf32, #tpu.memory_space<vmem>>, vector<1x64x128xf32>
    %84 = vector.shape_cast %83 : vector<1x64x128xf32> to vector<64x128xf32>
    %cst_68 = arith.constant dense<0.000000e+00> : vector<8x128xf32>
    %85 = tpu.matmul %82, %84, %cst_68 {dimension_numbers = #tpu.dot_dimension_numbers<[1], [0], [0], [1], [0, 0, 1, 1], [], []>} : vector<8x64xf32>, vector<64x128xf32>, vector<8x128xf32> -> vector<8x128xf32>
    %86 = arith.addf %58, %85 : vector<8x128xf32>
    %c3 = arith.constant 3 : index
    %c0_69 = arith.constant 0 : index
    %c0_70 = arith.constant 0 : index
    %87 = vector.load %arg2[%c3, %c0_69, %c0_70] : memref<8x128x64xf32, #tpu.memory_space<vmem>>, vector<1x128x64xf32>
    %88 = vector.shape_cast %87 : vector<1x128x64xf32> to vector<128x64xf32>
    %cst_71 = arith.constant dense<0.000000e+00> : vector<8x64xf32>
    %89 = tpu.matmul %1, %88, %cst_71 {dimension_numbers = #tpu.dot_dimension_numbers<[1], [0], [0], [1], [0, 0, 1, 1], [], []>} : vector<8x128xf32>, vector<128x64xf32>, vector<8x64xf32> -> vector<8x64xf32>
    %c3_72 = arith.constant 3 : index
    %c0_73 = arith.constant 0 : index
    %c0_74 = arith.constant 0 : index
    %90 = vector.load %arg3[%c3_72, %c0_73, %c0_74] : memref<8x128x64xf32, #tpu.memory_space<vmem>>, vector<1x128x64xf32>
    %91 = vector.shape_cast %90 : vector<1x128x64xf32> to vector<128x64xf32>
    %cst_75 = arith.constant dense<0.000000e+00> : vector<8x64xf32>
    %92 = tpu.matmul %1, %91, %cst_75 {dimension_numbers = #tpu.dot_dimension_numbers<[1], [0], [0], [1], [0, 0, 1, 1], [], []>} : vector<8x128xf32>, vector<128x64xf32>, vector<8x64xf32> -> vector<8x64xf32>
    %c3_76 = arith.constant 3 : index
    %c0_77 = arith.constant 0 : index
    %c0_78 = arith.constant 0 : index
    %93 = vector.load %arg4[%c3_76, %c0_77, %c0_78] : memref<8x128x64xf32, #tpu.memory_space<vmem>>, vector<1x128x64xf32>
    %94 = vector.shape_cast %93 : vector<1x128x64xf32> to vector<128x64xf32>
    %cst_79 = arith.constant dense<0.000000e+00> : vector<8x64xf32>
    %95 = tpu.matmul %1, %94, %cst_79 {dimension_numbers = #tpu.dot_dimension_numbers<[1], [0], [0], [1], [0, 0, 1, 1], [], []>} : vector<8x128xf32>, vector<128x64xf32>, vector<8x64xf32> -> vector<8x64xf32>
    %cst_80 = arith.constant dense<0.000000e+00> : vector<8x8xf32>
    %96 = tpu.matmul %89, %92, %cst_80 {dimension_numbers = #tpu.dot_dimension_numbers<[1], [1], [0], [0], [0, 0, 1, 0], [], []>} : vector<8x64xf32>, vector<8x64xf32>, vector<8x8xf32> -> vector<8x8xf32>
    %cst_81 = arith.constant 1.250000e-01 : f32
    %97 = vector.broadcast %cst_81 : f32 to vector<8x8xf32>
    %98 = arith.mulf %96, %97 : vector<8x8xf32>
    %cst_82 = arith.constant dense<0xFF800000> : vector<8xf32>
    %99 = vector.multi_reduction <maximumf>, %98, %cst_82 [1] : vector<8x8xf32> to vector<8xf32>
    %100 = vector.shape_cast %99 : vector<8xf32> to vector<8x1xf32>
    %101 = vector.broadcast %100 : vector<8x1xf32> to vector<8x8xf32>
    %102 = arith.subf %98, %101 : vector<8x8xf32>
    %103 = math.exp %102 : vector<8x8xf32>
    %cst_83 = arith.constant dense<0.000000e+00> : vector<8xf32>
    %104 = vector.multi_reduction <add>, %103, %cst_83 [1] : vector<8x8xf32> to vector<8xf32>
    %105 = vector.shape_cast %104 : vector<8xf32> to vector<8x1xf32>
    %106 = vector.broadcast %105 : vector<8x1xf32> to vector<8x8xf32>
    %107 = arith.divf %103, %106 : vector<8x8xf32>
    %c0_84 = arith.constant 0 : index
    %c0_85 = arith.constant 0 : index
    %108 = vector.load %arg6[%c0_84, %c0_85] : memref<8x8xf32, #tpu.memory_space<vmem>>, vector<8x8xf32>
    %109 = arith.mulf %107, %108 : vector<8x8xf32>
    %cst_86 = arith.constant dense<0.000000e+00> : vector<8x64xf32>
    %110 = tpu.matmul %109, %95, %cst_86 {dimension_numbers = #tpu.dot_dimension_numbers<[1], [0], [0], [1], [0, 0, 1, 1], [], []>} : vector<8x8xf32>, vector<8x64xf32>, vector<8x64xf32> -> vector<8x64xf32>
    %c3_87 = arith.constant 3 : index
    %c0_88 = arith.constant 0 : index
    %c0_89 = arith.constant 0 : index
    %111 = vector.load %arg5[%c3_87, %c0_88, %c0_89] : memref<8x64x128xf32, #tpu.memory_space<vmem>>, vector<1x64x128xf32>
    %112 = vector.shape_cast %111 : vector<1x64x128xf32> to vector<64x128xf32>
    %cst_90 = arith.constant dense<0.000000e+00> : vector<8x128xf32>
    %113 = tpu.matmul %110, %112, %cst_90 {dimension_numbers = #tpu.dot_dimension_numbers<[1], [0], [0], [1], [0, 0, 1, 1], [], []>} : vector<8x64xf32>, vector<64x128xf32>, vector<8x128xf32> -> vector<8x128xf32>
    %114 = arith.addf %86, %113 : vector<8x128xf32>
    %c4 = arith.constant 4 : index
    %c0_91 = arith.constant 0 : index
    %c0_92 = arith.constant 0 : index
    %115 = vector.load %arg2[%c4, %c0_91, %c0_92] : memref<8x128x64xf32, #tpu.memory_space<vmem>>, vector<1x128x64xf32>
    %116 = vector.shape_cast %115 : vector<1x128x64xf32> to vector<128x64xf32>
    %cst_93 = arith.constant dense<0.000000e+00> : vector<8x64xf32>
    %117 = tpu.matmul %1, %116, %cst_93 {dimension_numbers = #tpu.dot_dimension_numbers<[1], [0], [0], [1], [0, 0, 1, 1], [], []>} : vector<8x128xf32>, vector<128x64xf32>, vector<8x64xf32> -> vector<8x64xf32>
    %c4_94 = arith.constant 4 : index
    %c0_95 = arith.constant 0 : index
    %c0_96 = arith.constant 0 : index
    %118 = vector.load %arg3[%c4_94, %c0_95, %c0_96] : memref<8x128x64xf32, #tpu.memory_space<vmem>>, vector<1x128x64xf32>
    %119 = vector.shape_cast %118 : vector<1x128x64xf32> to vector<128x64xf32>
    %cst_97 = arith.constant dense<0.000000e+00> : vector<8x64xf32>
    %120 = tpu.matmul %1, %119, %cst_97 {dimension_numbers = #tpu.dot_dimension_numbers<[1], [0], [0], [1], [0, 0, 1, 1], [], []>} : vector<8x128xf32>, vector<128x64xf32>, vector<8x64xf32> -> vector<8x64xf32>
    %c4_98 = arith.constant 4 : index
    %c0_99 = arith.constant 0 : index
    %c0_100 = arith.constant 0 : index
    %121 = vector.load %arg4[%c4_98, %c0_99, %c0_100] : memref<8x128x64xf32, #tpu.memory_space<vmem>>, vector<1x128x64xf32>
    %122 = vector.shape_cast %121 : vector<1x128x64xf32> to vector<128x64xf32>
    %cst_101 = arith.constant dense<0.000000e+00> : vector<8x64xf32>
    %123 = tpu.matmul %1, %122, %cst_101 {dimension_numbers = #tpu.dot_dimension_numbers<[1], [0], [0], [1], [0, 0, 1, 1], [], []>} : vector<8x128xf32>, vector<128x64xf32>, vector<8x64xf32> -> vector<8x64xf32>
    %cst_102 = arith.constant dense<0.000000e+00> : vector<8x8xf32>
    %124 = tpu.matmul %117, %120, %cst_102 {dimension_numbers = #tpu.dot_dimension_numbers<[1], [1], [0], [0], [0, 0, 1, 0], [], []>} : vector<8x64xf32>, vector<8x64xf32>, vector<8x8xf32> -> vector<8x8xf32>
    %cst_103 = arith.constant 1.250000e-01 : f32
    %125 = vector.broadcast %cst_103 : f32 to vector<8x8xf32>
    %126 = arith.mulf %124, %125 : vector<8x8xf32>
    %cst_104 = arith.constant dense<0xFF800000> : vector<8xf32>
    %127 = vector.multi_reduction <maximumf>, %126, %cst_104 [1] : vector<8x8xf32> to vector<8xf32>
    %128 = vector.shape_cast %127 : vector<8xf32> to vector<8x1xf32>
    %129 = vector.broadcast %128 : vector<8x1xf32> to vector<8x8xf32>
    %130 = arith.subf %126, %129 : vector<8x8xf32>
    %131 = math.exp %130 : vector<8x8xf32>
    %cst_105 = arith.constant dense<0.000000e+00> : vector<8xf32>
    %132 = vector.multi_reduction <add>, %131, %cst_105 [1] : vector<8x8xf32> to vector<8xf32>
    %133 = vector.shape_cast %132 : vector<8xf32> to vector<8x1xf32>
    %134 = vector.broadcast %133 : vector<8x1xf32> to vector<8x8xf32>
    %135 = arith.divf %131, %134 : vector<8x8xf32>
    %c0_106 = arith.constant 0 : index
    %c0_107 = arith.constant 0 : index
    %136 = vector.load %arg6[%c0_106, %c0_107] : memref<8x8xf32, #tpu.memory_space<vmem>>, vector<8x8xf32>
    %137 = arith.mulf %135, %136 : vector<8x8xf32>
    %cst_108 = arith.constant dense<0.000000e+00> : vector<8x64xf32>
    %138 = tpu.matmul %137, %123, %cst_108 {dimension_numbers = #tpu.dot_dimension_numbers<[1], [0], [0], [1], [0, 0, 1, 1], [], []>} : vector<8x8xf32>, vector<8x64xf32>, vector<8x64xf32> -> vector<8x64xf32>
    %c4_109 = arith.constant 4 : index
    %c0_110 = arith.constant 0 : index
    %c0_111 = arith.constant 0 : index
    %139 = vector.load %arg5[%c4_109, %c0_110, %c0_111] : memref<8x64x128xf32, #tpu.memory_space<vmem>>, vector<1x64x128xf32>
    %140 = vector.shape_cast %139 : vector<1x64x128xf32> to vector<64x128xf32>
    %cst_112 = arith.constant dense<0.000000e+00> : vector<8x128xf32>
    %141 = tpu.matmul %138, %140, %cst_112 {dimension_numbers = #tpu.dot_dimension_numbers<[1], [0], [0], [1], [0, 0, 1, 1], [], []>} : vector<8x64xf32>, vector<64x128xf32>, vector<8x128xf32> -> vector<8x128xf32>
    %142 = arith.addf %114, %141 : vector<8x128xf32>
    %c5 = arith.constant 5 : index
    %c0_113 = arith.constant 0 : index
    %c0_114 = arith.constant 0 : index
    %143 = vector.load %arg2[%c5, %c0_113, %c0_114] : memref<8x128x64xf32, #tpu.memory_space<vmem>>, vector<1x128x64xf32>
    %144 = vector.shape_cast %143 : vector<1x128x64xf32> to vector<128x64xf32>
    %cst_115 = arith.constant dense<0.000000e+00> : vector<8x64xf32>
    %145 = tpu.matmul %1, %144, %cst_115 {dimension_numbers = #tpu.dot_dimension_numbers<[1], [0], [0], [1], [0, 0, 1, 1], [], []>} : vector<8x128xf32>, vector<128x64xf32>, vector<8x64xf32> -> vector<8x64xf32>
    %c5_116 = arith.constant 5 : index
    %c0_117 = arith.constant 0 : index
    %c0_118 = arith.constant 0 : index
    %146 = vector.load %arg3[%c5_116, %c0_117, %c0_118] : memref<8x128x64xf32, #tpu.memory_space<vmem>>, vector<1x128x64xf32>
    %147 = vector.shape_cast %146 : vector<1x128x64xf32> to vector<128x64xf32>
    %cst_119 = arith.constant dense<0.000000e+00> : vector<8x64xf32>
    %148 = tpu.matmul %1, %147, %cst_119 {dimension_numbers = #tpu.dot_dimension_numbers<[1], [0], [0], [1], [0, 0, 1, 1], [], []>} : vector<8x128xf32>, vector<128x64xf32>, vector<8x64xf32> -> vector<8x64xf32>
    %c5_120 = arith.constant 5 : index
    %c0_121 = arith.constant 0 : index
    %c0_122 = arith.constant 0 : index
    %149 = vector.load %arg4[%c5_120, %c0_121, %c0_122] : memref<8x128x64xf32, #tpu.memory_space<vmem>>, vector<1x128x64xf32>
    %150 = vector.shape_cast %149 : vector<1x128x64xf32> to vector<128x64xf32>
    %cst_123 = arith.constant dense<0.000000e+00> : vector<8x64xf32>
    %151 = tpu.matmul %1, %150, %cst_123 {dimension_numbers = #tpu.dot_dimension_numbers<[1], [0], [0], [1], [0, 0, 1, 1], [], []>} : vector<8x128xf32>, vector<128x64xf32>, vector<8x64xf32> -> vector<8x64xf32>
    %cst_124 = arith.constant dense<0.000000e+00> : vector<8x8xf32>
    %152 = tpu.matmul %145, %148, %cst_124 {dimension_numbers = #tpu.dot_dimension_numbers<[1], [1], [0], [0], [0, 0, 1, 0], [], []>} : vector<8x64xf32>, vector<8x64xf32>, vector<8x8xf32> -> vector<8x8xf32>
    %cst_125 = arith.constant 1.250000e-01 : f32
    %153 = vector.broadcast %cst_125 : f32 to vector<8x8xf32>
    %154 = arith.mulf %152, %153 : vector<8x8xf32>
    %cst_126 = arith.constant dense<0xFF800000> : vector<8xf32>
    %155 = vector.multi_reduction <maximumf>, %154, %cst_126 [1] : vector<8x8xf32> to vector<8xf32>
    %156 = vector.shape_cast %155 : vector<8xf32> to vector<8x1xf32>
    %157 = vector.broadcast %156 : vector<8x1xf32> to vector<8x8xf32>
    %158 = arith.subf %154, %157 : vector<8x8xf32>
    %159 = math.exp %158 : vector<8x8xf32>
    %cst_127 = arith.constant dense<0.000000e+00> : vector<8xf32>
    %160 = vector.multi_reduction <add>, %159, %cst_127 [1] : vector<8x8xf32> to vector<8xf32>
    %161 = vector.shape_cast %160 : vector<8xf32> to vector<8x1xf32>
    %162 = vector.broadcast %161 : vector<8x1xf32> to vector<8x8xf32>
    %163 = arith.divf %159, %162 : vector<8x8xf32>
    %c0_128 = arith.constant 0 : index
    %c0_129 = arith.constant 0 : index
    %164 = vector.load %arg6[%c0_128, %c0_129] : memref<8x8xf32, #tpu.memory_space<vmem>>, vector<8x8xf32>
    %165 = arith.mulf %163, %164 : vector<8x8xf32>
    %cst_130 = arith.constant dense<0.000000e+00> : vector<8x64xf32>
    %166 = tpu.matmul %165, %151, %cst_130 {dimension_numbers = #tpu.dot_dimension_numbers<[1], [0], [0], [1], [0, 0, 1, 1], [], []>} : vector<8x8xf32>, vector<8x64xf32>, vector<8x64xf32> -> vector<8x64xf32>
    %c5_131 = arith.constant 5 : index
    %c0_132 = arith.constant 0 : index
    %c0_133 = arith.constant 0 : index
    %167 = vector.load %arg5[%c5_131, %c0_132, %c0_133] : memref<8x64x128xf32, #tpu.memory_space<vmem>>, vector<1x64x128xf32>
    %168 = vector.shape_cast %167 : vector<1x64x128xf32> to vector<64x128xf32>
    %cst_134 = arith.constant dense<0.000000e+00> : vector<8x128xf32>
    %169 = tpu.matmul %166, %168, %cst_134 {dimension_numbers = #tpu.dot_dimension_numbers<[1], [0], [0], [1], [0, 0, 1, 1], [], []>} : vector<8x64xf32>, vector<64x128xf32>, vector<8x128xf32> -> vector<8x128xf32>
    %170 = arith.addf %142, %169 : vector<8x128xf32>
    %c6 = arith.constant 6 : index
    %c0_135 = arith.constant 0 : index
    %c0_136 = arith.constant 0 : index
    %171 = vector.load %arg2[%c6, %c0_135, %c0_136] : memref<8x128x64xf32, #tpu.memory_space<vmem>>, vector<1x128x64xf32>
    %172 = vector.shape_cast %171 : vector<1x128x64xf32> to vector<128x64xf32>
    %cst_137 = arith.constant dense<0.000000e+00> : vector<8x64xf32>
    %173 = tpu.matmul %1, %172, %cst_137 {dimension_numbers = #tpu.dot_dimension_numbers<[1], [0], [0], [1], [0, 0, 1, 1], [], []>} : vector<8x128xf32>, vector<128x64xf32>, vector<8x64xf32> -> vector<8x64xf32>
    %c6_138 = arith.constant 6 : index
    %c0_139 = arith.constant 0 : index
    %c0_140 = arith.constant 0 : index
    %174 = vector.load %arg3[%c6_138, %c0_139, %c0_140] : memref<8x128x64xf32, #tpu.memory_space<vmem>>, vector<1x128x64xf32>
    %175 = vector.shape_cast %174 : vector<1x128x64xf32> to vector<128x64xf32>
    %cst_141 = arith.constant dense<0.000000e+00> : vector<8x64xf32>
    %176 = tpu.matmul %1, %175, %cst_141 {dimension_numbers = #tpu.dot_dimension_numbers<[1], [0], [0], [1], [0, 0, 1, 1], [], []>} : vector<8x128xf32>, vector<128x64xf32>, vector<8x64xf32> -> vector<8x64xf32>
    %c6_142 = arith.constant 6 : index
    %c0_143 = arith.constant 0 : index
    %c0_144 = arith.constant 0 : index
    %177 = vector.load %arg4[%c6_142, %c0_143, %c0_144] : memref<8x128x64xf32, #tpu.memory_space<vmem>>, vector<1x128x64xf32>
    %178 = vector.shape_cast %177 : vector<1x128x64xf32> to vector<128x64xf32>
    %cst_145 = arith.constant dense<0.000000e+00> : vector<8x64xf32>
    %179 = tpu.matmul %1, %178, %cst_145 {dimension_numbers = #tpu.dot_dimension_numbers<[1], [0], [0], [1], [0, 0, 1, 1], [], []>} : vector<8x128xf32>, vector<128x64xf32>, vector<8x64xf32> -> vector<8x64xf32>
    %cst_146 = arith.constant dense<0.000000e+00> : vector<8x8xf32>
    %180 = tpu.matmul %173, %176, %cst_146 {dimension_numbers = #tpu.dot_dimension_numbers<[1], [1], [0], [0], [0, 0, 1, 0], [], []>} : vector<8x64xf32>, vector<8x64xf32>, vector<8x8xf32> -> vector<8x8xf32>
    %cst_147 = arith.constant 1.250000e-01 : f32
    %181 = vector.broadcast %cst_147 : f32 to vector<8x8xf32>
    %182 = arith.mulf %180, %181 : vector<8x8xf32>
    %cst_148 = arith.constant dense<0xFF800000> : vector<8xf32>
    %183 = vector.multi_reduction <maximumf>, %182, %cst_148 [1] : vector<8x8xf32> to vector<8xf32>
    %184 = vector.shape_cast %183 : vector<8xf32> to vector<8x1xf32>
    %185 = vector.broadcast %184 : vector<8x1xf32> to vector<8x8xf32>
    %186 = arith.subf %182, %185 : vector<8x8xf32>
    %187 = math.exp %186 : vector<8x8xf32>
    %cst_149 = arith.constant dense<0.000000e+00> : vector<8xf32>
    %188 = vector.multi_reduction <add>, %187, %cst_149 [1] : vector<8x8xf32> to vector<8xf32>
    %189 = vector.shape_cast %188 : vector<8xf32> to vector<8x1xf32>
    %190 = vector.broadcast %189 : vector<8x1xf32> to vector<8x8xf32>
    %191 = arith.divf %187, %190 : vector<8x8xf32>
    %c0_150 = arith.constant 0 : index
    %c0_151 = arith.constant 0 : index
    %192 = vector.load %arg6[%c0_150, %c0_151] : memref<8x8xf32, #tpu.memory_space<vmem>>, vector<8x8xf32>
    %193 = arith.mulf %191, %192 : vector<8x8xf32>
    %cst_152 = arith.constant dense<0.000000e+00> : vector<8x64xf32>
    %194 = tpu.matmul %193, %179, %cst_152 {dimension_numbers = #tpu.dot_dimension_numbers<[1], [0], [0], [1], [0, 0, 1, 1], [], []>} : vector<8x8xf32>, vector<8x64xf32>, vector<8x64xf32> -> vector<8x64xf32>
    %c6_153 = arith.constant 6 : index
    %c0_154 = arith.constant 0 : index
    %c0_155 = arith.constant 0 : index
    %195 = vector.load %arg5[%c6_153, %c0_154, %c0_155] : memref<8x64x128xf32, #tpu.memory_space<vmem>>, vector<1x64x128xf32>
    %196 = vector.shape_cast %195 : vector<1x64x128xf32> to vector<64x128xf32>
    %cst_156 = arith.constant dense<0.000000e+00> : vector<8x128xf32>
    %197 = tpu.matmul %194, %196, %cst_156 {dimension_numbers = #tpu.dot_dimension_numbers<[1], [0], [0], [1], [0, 0, 1, 1], [], []>} : vector<8x64xf32>, vector<64x128xf32>, vector<8x128xf32> -> vector<8x128xf32>
    %198 = arith.addf %170, %197 : vector<8x128xf32>
    %c7 = arith.constant 7 : index
    %c0_157 = arith.constant 0 : index
    %c0_158 = arith.constant 0 : index
    %199 = vector.load %arg2[%c7, %c0_157, %c0_158] : memref<8x128x64xf32, #tpu.memory_space<vmem>>, vector<1x128x64xf32>
    %200 = vector.shape_cast %199 : vector<1x128x64xf32> to vector<128x64xf32>
    %cst_159 = arith.constant dense<0.000000e+00> : vector<8x64xf32>
    %201 = tpu.matmul %1, %200, %cst_159 {dimension_numbers = #tpu.dot_dimension_numbers<[1], [0], [0], [1], [0, 0, 1, 1], [], []>} : vector<8x128xf32>, vector<128x64xf32>, vector<8x64xf32> -> vector<8x64xf32>
    %c7_160 = arith.constant 7 : index
    %c0_161 = arith.constant 0 : index
    %c0_162 = arith.constant 0 : index
    %202 = vector.load %arg3[%c7_160, %c0_161, %c0_162] : memref<8x128x64xf32, #tpu.memory_space<vmem>>, vector<1x128x64xf32>
    %203 = vector.shape_cast %202 : vector<1x128x64xf32> to vector<128x64xf32>
    %cst_163 = arith.constant dense<0.000000e+00> : vector<8x64xf32>
    %204 = tpu.matmul %1, %203, %cst_163 {dimension_numbers = #tpu.dot_dimension_numbers<[1], [0], [0], [1], [0, 0, 1, 1], [], []>} : vector<8x128xf32>, vector<128x64xf32>, vector<8x64xf32> -> vector<8x64xf32>
    %c7_164 = arith.constant 7 : index
    %c0_165 = arith.constant 0 : index
    %c0_166 = arith.constant 0 : index
    %205 = vector.load %arg4[%c7_164, %c0_165, %c0_166] : memref<8x128x64xf32, #tpu.memory_space<vmem>>, vector<1x128x64xf32>
    %206 = vector.shape_cast %205 : vector<1x128x64xf32> to vector<128x64xf32>
    %cst_167 = arith.constant dense<0.000000e+00> : vector<8x64xf32>
    %207 = tpu.matmul %1, %206, %cst_167 {dimension_numbers = #tpu.dot_dimension_numbers<[1], [0], [0], [1], [0, 0, 1, 1], [], []>} : vector<8x128xf32>, vector<128x64xf32>, vector<8x64xf32> -> vector<8x64xf32>
    %cst_168 = arith.constant dense<0.000000e+00> : vector<8x8xf32>
    %208 = tpu.matmul %201, %204, %cst_168 {dimension_numbers = #tpu.dot_dimension_numbers<[1], [1], [0], [0], [0, 0, 1, 0], [], []>} : vector<8x64xf32>, vector<8x64xf32>, vector<8x8xf32> -> vector<8x8xf32>
    %cst_169 = arith.constant 1.250000e-01 : f32
    %209 = vector.broadcast %cst_169 : f32 to vector<8x8xf32>
    %210 = arith.mulf %208, %209 : vector<8x8xf32>
    %cst_170 = arith.constant dense<0xFF800000> : vector<8xf32>
    %211 = vector.multi_reduction <maximumf>, %210, %cst_170 [1] : vector<8x8xf32> to vector<8xf32>
    %212 = vector.shape_cast %211 : vector<8xf32> to vector<8x1xf32>
    %213 = vector.broadcast %212 : vector<8x1xf32> to vector<8x8xf32>
    %214 = arith.subf %210, %213 : vector<8x8xf32>
    %215 = math.exp %214 : vector<8x8xf32>
    %cst_171 = arith.constant dense<0.000000e+00> : vector<8xf32>
    %216 = vector.multi_reduction <add>, %215, %cst_171 [1] : vector<8x8xf32> to vector<8xf32>
    %217 = vector.shape_cast %216 : vector<8xf32> to vector<8x1xf32>
    %218 = vector.broadcast %217 : vector<8x1xf32> to vector<8x8xf32>
    %219 = arith.divf %215, %218 : vector<8x8xf32>
    %c0_172 = arith.constant 0 : index
    %c0_173 = arith.constant 0 : index
    %220 = vector.load %arg6[%c0_172, %c0_173] : memref<8x8xf32, #tpu.memory_space<vmem>>, vector<8x8xf32>
    %221 = arith.mulf %219, %220 : vector<8x8xf32>
    %cst_174 = arith.constant dense<0.000000e+00> : vector<8x64xf32>
    %222 = tpu.matmul %221, %207, %cst_174 {dimension_numbers = #tpu.dot_dimension_numbers<[1], [0], [0], [1], [0, 0, 1, 1], [], []>} : vector<8x8xf32>, vector<8x64xf32>, vector<8x64xf32> -> vector<8x64xf32>
    %c7_175 = arith.constant 7 : index
    %c0_176 = arith.constant 0 : index
    %c0_177 = arith.constant 0 : index
    %223 = vector.load %arg5[%c7_175, %c0_176, %c0_177] : memref<8x64x128xf32, #tpu.memory_space<vmem>>, vector<1x64x128xf32>
    %224 = vector.shape_cast %223 : vector<1x64x128xf32> to vector<64x128xf32>
    %cst_178 = arith.constant dense<0.000000e+00> : vector<8x128xf32>
    %225 = tpu.matmul %222, %224, %cst_178 {dimension_numbers = #tpu.dot_dimension_numbers<[1], [0], [0], [1], [0, 0, 1, 1], [], []>} : vector<8x64xf32>, vector<64x128xf32>, vector<8x128xf32> -> vector<8x128xf32>
    %226 = arith.addf %198, %225 : vector<8x128xf32>
    %c0_179 = arith.constant 0 : index
    %c0_180 = arith.constant 0 : index
    %c0_181 = arith.constant 0 : index
    %227 = vector.load %arg7[%c0_179, %c0_180, %c0_181] : memref<1x8x128xf32, #tpu.memory_space<vmem>>, vector<1x8x128xf32>
    %228 = vector.shape_cast %227 : vector<1x8x128xf32> to vector<8x128xf32>
    %229 = vector.shape_cast %226 : vector<8x128xf32> to vector<1x8x128xf32>
    tpu.vector_store %arg7[%c0_179, %c0_180, %c0_181], %229 {strides = array<i32>} : memref<1x8x128xf32, #tpu.memory_space<vmem>>, vector<1x8x128xf32>,
    return
  }
  func.func @transform_0(%arg0: i32) -> (i32, i32, i32) {
    %c0_i32 = arith.constant 0 : i32
    %c0_i32_0 = arith.constant 0 : i32
    %c0_i32_1 = arith.constant 0 : i32
    return %arg0, %c0_i32, %c0_i32_0 : i32, i32, i32
  }
  func.func @transform_1(%arg0: i32) -> (i32, i32, i32) {
    %c0_i32 = arith.constant 0 : i32
    %c0_i32_0 = arith.constant 0 : i32
    %c0_i32_1 = arith.constant 0 : i32
    %c0_i32_2 = arith.constant 0 : i32
    return %c0_i32, %c0_i32_0, %c0_i32_1 : i32, i32, i32
  }
  func.func @transform_2(%arg0: i32) -> (i32, i32, i32) {
    %c0_i32 = arith.constant 0 : i32
    %c0_i32_0 = arith.constant 0 : i32
    %c0_i32_1 = arith.constant 0 : i32
    %c0_i32_2 = arith.constant 0 : i32
    return %c0_i32, %c0_i32_0, %c0_i32_1 : i32, i32, i32
  }
  func.func @transform_3(%arg0: i32) -> (i32, i32, i32) {
    %c0_i32 = arith.constant 0 : i32
    %c0_i32_0 = arith.constant 0 : i32
    %c0_i32_1 = arith.constant 0 : i32
    %c0_i32_2 = arith.constant 0 : i32
    return %c0_i32, %c0_i32_0, %c0_i32_1 : i32, i32, i32
  }
  func.func @transform_4(%arg0: i32) -> (i32, i32, i32) {
    %c0_i32 = arith.constant 0 : i32
    %c0_i32_0 = arith.constant 0 : i32
    %c0_i32_1 = arith.constant 0 : i32
    %c0_i32_2 = arith.constant 0 : i32
    return %c0_i32, %c0_i32_0, %c0_i32_1 : i32, i32, i32
  }
  func.func @transform_5(%arg0: i32) -> (i32, i32) {
    %c0_i32 = arith.constant 0 : i32
    %c0_i32_0 = arith.constant 0 : i32
    %c0_i32_1 = arith.constant 0 : i32
    return %c0_i32, %c0_i32_0 : i32, i32
  }
  func.func @transform_6(%arg0: i32) -> (i32, i32, i32) {
    %c0_i32 = arith.constant 0 : i32
    %c0_i32_0 = arith.constant 0 : i32
    %c0_i32_1 = arith.constant 0 : i32
    return %arg0, %c0_i32, %c0_i32_0 : i32, i32, i32
  }
}

</mosaic_0001>

<llo_original>
// kernel: tpu_custom_call.1
$region0: #{tpu_custom_call.1}
  #allocation0 [shape = 'u32[]', space=smem, size = 0x4, offset = 0x4, fixed_abs, tag = 'smem constant byte address 0x4 - core index']
  #allocation1 [shape = 'u32[72,128]{1,0:T(1,128)}', space=vmem, size = 0x9000, scoped, tag = 'internal scratch']
  %s0 = inlined_call_operand.vmem [shape: f32[2,8,128], index: 0, kind: input, shape index: {}]
  %s1 = inlined_call_operand.vmem [shape: f32[8,128,64], index: 1, kind: input, shape index: {}]
  %s2 = inlined_call_operand.vmem [shape: f32[8,128,64], index: 2, kind: input, shape index: {}]
  %s3 = inlined_call_operand.vmem [shape: f32[8,128,64], index: 3, kind: input, shape index: {}]
  %s4 = inlined_call_operand.vmem [shape: f32[8,64,128], index: 4, kind: input, shape index: {}]
  %s5 = inlined_call_operand.vmem [shape: f32[8,8], index: 5, kind: input, shape index: {}]
  %s6 = inlined_call_operand.hbm [shape: f32[2,8,128], index: 6, kind: output, shape index: {}]
  %s7 = sld [smem:[#allocation0]]
  $region57: #{tpu_custom_call.1} parent=0
    _
  %s9 = ssub.s32 1, %s7
  %s10 = scalar_select 0, %s9, %s7
  $region1: #{tpu_custom_call.1} parent=0
    #allocation2 [shape = 'u8[8192]{0}', space=vmem, size = 0x2000, scoped, tag = 'output window, operand 0']
    #allocation3 [shape = 's32[2]{0}', space=sflag, size = 0x8, scoped, tag = 'scoped memory for tpu_custom_call.1']
    %11 = vsyncpa [#allocation3], 0
    %s12 = scalar_lea.sflag [#allocation3], 1
    %13 = vsyncpa %s12, 0
    loop: start=0, step=1, limit=4
    $region2: #{tpu_custom_call.1} parent=1 // loop_pre_header
      _
    $region3: #{tpu_custom_call.1} parent=1 // loop_header
      %s15 = sphi 0, %s19
      %p16 = scmp.ge.s32.totalorder %s15, 4
      %s25 = sphi 0, %s27
      %s28 = sphi 0, %s25
      %s29 = sphi 0, %s28
      %s45 = sphi 0, %s29
      %s49 = sphi 0, %s49
      %s51 = sphi 0, %s49
      %s52 = sphi 0, %s51
      %s66 = sphi 0, %s52
      %s70 = sphi 0, %s70
      %s72 = sphi 0, %s70
      %s73 = sphi 0, %s72
      %s87 = sphi 0, %s73
      %s91 = sphi 0, %s91
      %s93 = sphi 0, %s91
      %s94 = sphi 0, %s93
      %s108 = sphi 0, %s94
      %s112 = sphi 0, %s112
      %s114 = sphi 0, %s112
      %s115 = sphi 0, %s114
      %s129 = sphi 0, %s115
      %s133 = sphi 0, %s133
      %s135 = sphi 0, %s133
      %s136 = sphi 0, %s135
      %s150 = sphi 0, %s136
      %s156 = sphi 0, %s158
      %s159 = sphi 0, %s156
      %s160 = sphi 0, %s159
      %s176 = sphi 0, %s160
    $region4: #{tpu_custom_call.1} parent=1 // loop_header_branch
      %18 = sbr.rel (%p16) target = $region8
    $region5: #{tpu_custom_call.1} parent=1 // loop_body
      %s20 = ssub.s32 %s15, 1
      %s21 = ssub.s32 %s15, 2
      %s22 = sadd.s32 %s15, 1
      %s23 = ssub.s32 %s15, %s22
      %p24 = scmp.eq.s32.totalorder %s23, 0
      %s26 = sadd.s32 %s25, 1
      %s27 = scalar_select %p24, %s25, %s26
      %p30 = pneg %p24
      %p31 = scmp.eq.s32.totalorder %s15, 1
      %p32 = por %p30, %p31
      %p33 = scmp.ne.s32.totalorder %s25, %s28
      %p34 = scmp.eq.s32.totalorder %s15, 0
      %p35 = por %p33, %p34
      %p36 = scmp.ne.s32.totalorder %s25, %s28
      %p37 = scmp.eq.s32.totalorder %s20, 1
      %p38 = por %p36, %p37
      %p39 = scmp.ne.s32.totalorder %s28, %s29
      %p40 = scmp.eq.s32.totalorder %s20, 0
      %p41 = por %p39, %p40
      %p42 = scmp.ne.s32.totalorder %s28, %s29
      %p43 = scmp.eq.s32.totalorder %s21, 1
      %p44 = por %p42, %p43
      %p46 = scmp.ne.s32.totalorder %s29, %s45
      %p47 = scmp.eq.s32.totalorder %s21, 0
      %p48 = por %p46, %p47
      %s50 = sadd.s32 %s49, 1
      %p53 = scmp.eq.s32.totalorder %s15, 1
      %p54 = scmp.ne.s32.totalorder %s49, %s51
      %p55 = scmp.eq.s32.totalorder %s15, 0
      %p56 = por %p54, %p55
      %p57 = scmp.ne.s32.totalorder %s49, %s51
      %p58 = scmp.eq.s32.totalorder %s20, 1
      %p59 = por %p57, %p58
      %p60 = scmp.ne.s32.totalorder %s51, %s52
      %p61 = scmp.eq.s32.totalorder %s20, 0
      %p62 = por %p60, %p61
      %p63 = scmp.ne.s32.totalorder %s51, %s52
      %p64 = scmp.eq.s32.totalorder %s21, 1
      %p65 = por %p63, %p64
      %p67 = scmp.ne.s32.totalorder %s52, %s66
      %p68 = scmp.eq.s32.totalorder %s21, 0
      %p69 = por %p67, %p68
      %s71 = sadd.s32 %s70, 1
      %p74 = scmp.eq.s32.totalorder %s15, 1
      %p75 = scmp.ne.s32.totalorder %s70, %s72
      %p76 = scmp.eq.s32.totalorder %s15, 0
      %p77 = por %p75, %p76
      %p78 = scmp.ne.s32.totalorder %s70, %s72
      %p79 = scmp.eq.s32.totalorder %s20, 1
      %p80 = por %p78, %p79
      %p81 = scmp.ne.s32.totalorder %s72, %s73
      %p82 = scmp.eq.s32.totalorder %s20, 0
      %p83 = por %p81, %p82
      %p84 = scmp.ne.s32.totalorder %s72, %s73
      %p85 = scmp.eq.s32.totalorder %s21, 1
      %p86 = por %p84, %p85
      %p88 = scmp.ne.s32.totalorder %s73, %s87
      %p89 = scmp.eq.s32.totalorder %s21, 0
      %p90 = por %p88, %p89
      %s92 = sadd.s32 %s91, 1
      %p95 = scmp.eq.s32.totalorder %s15, 1
      %p96 = scmp.ne.s32.totalorder %s91, %s93
      %p97 = scmp.eq.s32.totalorder %s15, 0
      %p98 = por %p96, %p97
      %p99 = scmp.ne.s32.totalorder %s91, %s93
      %p100 = scmp.eq.s32.totalorder %s20, 1
      %p101 = por %p99, %p100
      %p102 = scmp.ne.s32.totalorder %s93, %s94
      %p103 = scmp.eq.s32.totalorder %s20, 0
      %p104 = por %p102, %p103
      %p105 = scmp.ne.s32.totalorder %s93, %s94
      %p106 = scmp.eq.s32.totalorder %s21, 1
      %p107 = por %p105, %p106
      %p109 = scmp.ne.s32.totalorder %s94, %s108
      %p110 = scmp.eq.s32.totalorder %s21, 0
      %p111 = por %p109, %p110
      %s113 = sadd.s32 %s112, 1
      %p116 = scmp.eq.s32.totalorder %s15, 1
      %p117 = scmp.ne.s32.totalorder %s112, %s114
      %p118 = scmp.eq.s32.totalorder %s15, 0
      %p119 = por %p117, %p118
      %p120 = scmp.ne.s32.totalorder %s112, %s114
      %p121 = scmp.eq.s32.totalorder %s20, 1
      %p122 = por %p120, %p121
      %p123 = scmp.ne.s32.totalorder %s114, %s115
      %p124 = scmp.eq.s32.totalorder %s20, 0
      %p125 = por %p123, %p124
      %p126 = scmp.ne.s32.totalorder %s114, %s115
      %p127 = scmp.eq.s32.totalorder %s21, 1
      %p128 = por %p126, %p127
      %p130 = scmp.ne.s32.totalorder %s115, %s129
      %p131 = scmp.eq.s32.totalorder %s21, 0
      %p132 = por %p130, %p131
      %s134 = sadd.s32 %s133, 1
      %p137 = scmp.eq.s32.totalorder %s15, 1
      %p138 = scmp.ne.s32.totalorder %s133, %s135
      %p139 = scmp.eq.s32.totalorder %s15, 0
      %p140 = por %p138, %p139
      %p141 = scmp.ne.s32.totalorder %s133, %s135
      %p142 = scmp.eq.s32.totalorder %s20, 1
      %p143 = por %p141, %p142
      %p144 = scmp.ne.s32.totalorder %s135, %s136
      %p145 = scmp.eq.s32.totalorder %s20, 0
      %p146 = por %p144, %p145
      %p147 = scmp.ne.s32.totalorder %s135, %s136
      %p148 = scmp.eq.s32.totalorder %s21, 1
      %p149 = por %p147, %p148
      %p151 = scmp.ne.s32.totalorder %s136, %s150
      %p152 = scmp.eq.s32.totalorder %s21, 0
      %p153 = por %p151, %p152
      %s154 = ssub.s32 %s15, %s22
      %p155 = scmp.eq.s32.totalorder %s154, 0
      %s157 = sadd.s32 %s156, 1
      %s158 = scalar_select %p155, %s156, %s157
      %p161 = pneg %p155
      %p162 = scmp.eq.s32.totalorder %s15, 1
      %p163 = por %p161, %p162
      %p164 = scmp.ne.s32.totalorder %s156, %s159
      %p165 = scmp.eq.s32.totalorder %s15, 0
      %p166 = por %p164, %p165
      %p167 = scmp.ne.s32.totalorder %s156, %s159
      %p168 = scmp.eq.s32.totalorder %s20, 1
      %p169 = por %p167, %p168
      %p170 = scmp.ne.s32.totalorder %s159, %s160
      %p171 = scmp.eq.s32.totalorder %s20, 0
      %p172 = por %p170, %p171
      %p173 = scmp.ne.s32.totalorder %s159, %s160
      %p174 = scmp.eq.s32.totalorder %s21, 1
      %p175 = por %p173, %p174
      %p177 = scmp.ne.s32.totalorder %s160, %s176
      %p178 = scmp.eq.s32.totalorder %s21, 0
      %p179 = por %p177, %p178
      %p180 = scmp.le.s32.totalorder 1, %s15
      %p181 = scmp.lt.s32.totalorder %s15, 3
      %p182 = pnand %p180, %p181
      %p183 = pneg %p182
      // Predicated region
      $region9: #{tpu_custom_call.1} parent=5 // pred_check
        _
      $region10: #{tpu_custom_call.1} parent=5 // pred_check_branch
        %185 = sbr.rel (%p182) target = $region12
      $region11: #{tpu_custom_call.1} parent=5 // pred_region
        %s186 = ssub.s32 %s15, 1
        // Predicated region
        $region13: #{tpu_custom_call.1} parent=11 // pred_check
          %p187 = pneg %p62
        $region14: #{tpu_custom_call.1} parent=11 // pred_check_branch
          %189 = sbr.rel (%p187) target = $region16
        $region15: #{tpu_custom_call.1} parent=11 // pred_region
          _
        $region16: #{tpu_custom_call.1} parent=11 // pred_fallthru
          _
        // Predicated region
        $region17: #{tpu_custom_call.1} parent=11 // pred_check
          %p190 = pneg %p83
        $region18: #{tpu_custom_call.1} parent=11 // pred_check_branch
          %192 = sbr.rel (%p190) target = $region20
        $region19: #{tpu_custom_call.1} parent=11 // pred_region
          _
        $region20: #{tpu_custom_call.1} parent=11 // pred_fallthru
          _
        // Predicated region
        $region21: #{tpu_custom_call.1} parent=11 // pred_check
          %p193 = pneg %p104
        $region22: #{tpu_custom_call.1} parent=11 // pred_check_branch
          %195 = sbr.rel (%p193) target = $region24
        $region23: #{tpu_custom_call.1} parent=11 // pred_region
          _
        $region24: #{tpu_custom_call.1} parent=11 // pred_fallthru
          _
        // Predicated region
        $region25: #{tpu_custom_call.1} parent=11 // pred_check
          %p196 = pneg %p125
        $region26: #{tpu_custom_call.1} parent=11 // pred_check_branch
          %198 = sbr.rel (%p196) target = $region28
        $region27: #{tpu_custom_call.1} parent=11 // pred_region
          _
        $region28: #{tpu_custom_call.1} parent=11 // pred_fallthru
          _
        // Predicated region
        $region29: #{tpu_custom_call.1} parent=11 // pred_check
          %p199 = pneg %p146
        $region30: #{tpu_custom_call.1} parent=11 // pred_check_branch
          %201 = sbr.rel (%p199) target = $region32
        $region31: #{tpu_custom_call.1} parent=11 // pred_region
          _
        $region32: #{tpu_custom_call.1} parent=11 // pred_fallthru
          _
      $region12: #{tpu_custom_call.1} parent=5 // pred_fallthru
        _
      %p202 = scmp.lt.s32.totalorder %s15, 2
      // Predicated region
      $region33: #{tpu_custom_call.1} parent=5 // pred_check
        %p203 = pneg %p202
      $region34: #{tpu_custom_call.1} parent=5 // pred_check_branch
        %205 = sbr.rel (%p203) target = $region36
      $region35: #{tpu_custom_call.1} parent=5 // pred_region
        // Predicated region
        $region37: #{tpu_custom_call.1} parent=35 // pred_check
          %p206 = pneg %p35
        $region38: #{tpu_custom_call.1} parent=35 // pred_check_branch
          %208 = sbr.rel (%p206) target = $region40
        $region39: #{tpu_custom_call.1} parent=35 // pred_region
          %p209 = scmp.lt.s32.totalorder %s15, 1
          %s210 = scalar_select %p209, %s15, 1
          %s211 = smul.addr %s210, 8
          %s212 = scalar_lea.vmem %s0, %s211
        $region40: #{tpu_custom_call.1} parent=35 // pred_fallthru
          _
      $region36: #{tpu_custom_call.1} parent=5 // pred_fallthru
        _
      %p213 = scmp.le.s32.totalorder 1, %s15
      %p214 = scmp.lt.s32.totalorder %s15, 3
      %p215 = pnand %p213, %p214
      %p216 = pneg %p215
      // Predicated region
      $region41: #{tpu_custom_call.1} parent=5 // pred_check
        _
      $region42: #{tpu_custom_call.1} parent=5 // pred_check_branch
        %218 = sbr.rel (%p215) target = $region44
      $region43: #{tpu_custom_call.1} parent=5 // pred_region
        %s219 = ssub.s32 %s15, 1
        %p220 = scmp.lt.s32.totalorder %s20, 1
        %s221 = scalar_select %p220, %s20, 1
        %s222 = smul.addr %s221, 8
        %s223 = scalar_lea.vmem %s0, %s222
        %p224 = pneg %p41
        %p225 = pneg %p38
        %p226 = pneg %p62
        %p227 = pneg %p59
        %p228 = pneg %p83
        %p229 = pneg %p80
        %p230 = pneg %p104
        %p231 = pneg %p101
        %p232 = pneg %p125
        %p233 = pneg %p122
        %p234 = pneg %p146
        %p235 = pneg %p143
        %p236 = pneg %p172
        %p237 = pneg %p169
        %s238 = sand.u32 %s159, 1
        %s239 = scalar_lea.sflag [#allocation3], %s238
        %s240 = sand.u32 %s159, 1
        %s241 = smul.addr %s240, 8
        %s242 = scalar_lea.vmem [#allocation2], %s241
        %p243 = scmp.lt.s32.totalorder %s20, 1
        %s244 = scalar_select %p243, %s20, 1
        %s245 = smul.addr %s244, 8
        %s246 = scalar_lea.vmem %s0, %s245
        %v247 = vld [vmem:[%s246] sm:$0xff]
        %v248 = vld [vmem:[%s1] sm:$0xff]
        %v249 = vld [vmem:[%s1 + $0x8] sm:$0xff]
        %v250 = vld [vmem:[%s1 + $0x10] sm:$0xff]
        %v251 = vld [vmem:[%s1 + $0x18] sm:$0xff]
        %v252 = vld [vmem:[%s1 + $0x20] sm:$0xff]
        %v253 = vld [vmem:[%s1 + $0x28] sm:$0xff]
        %v254 = vld [vmem:[%s1 + $0x30] sm:$0xff]
        %v255 = vld [vmem:[%s1 + $0x38] sm:$0xff]
        %v256 = vld [vmem:[%s1 + $0x40] sm:$0xff]
        %v257 = vld [vmem:[%s1 + $0x48] sm:$0xff]
        %v258 = vld [vmem:[%s1 + $0x50] sm:$0xff]
        %v259 = vld [vmem:[%s1 + $0x58] sm:$0xff]
        %v260 = vld [vmem:[%s1 + $0x60] sm:$0xff]
        %v261 = vld [vmem:[%s1 + $0x68] sm:$0xff]
        %v262 = vld [vmem:[%s1 + $0x70] sm:$0xff]
        %v263 = vld [vmem:[%s1 + $0x78] sm:$0xff]
        %264 = vmatpush.msra.mxu0 %v263
        %265 = vmatpush.msra.mxu0 %v262
        %266 = vmatpush.msra.mxu0 %v261
        %267 = vmatpush.msra.mxu0 %v260
        %268 = vmatpush.msra.mxu0 %v259
        %269 = vmatpush.msra.mxu0 %v258
        %270 = vmatpush.msra.mxu0 %v257
        %271 = vmatpush.msra.mxu0 %v256
        %272 = vmatpush.msra.mxu0 %v255
        %273 = vmatpush.msra.mxu0 %v254
        %274 = vmatpush.msra.mxu0 %v253
        %275 = vmatpush.msra.mxu0 %v252
        %276 = vmatpush.msra.mxu0 %v251
        %277 = vmatpush.msra.mxu0 %v250
        %278 = vmatpush.msra.mxu0 %v249
        %279 = vmatpush.msra.mxu0 %v248
        %280 = vmatmul.f32.gmra.mxu0 %v247
        %v281 = vpop.f32.mrf.mxu0
        %v282 = vadd.f32 0.0, %v281
        %283 = vdwg.mxu0
        %v284 = vld [vmem:[%s2] sm:$0xff]
        %v285 = vld [vmem:[%s2 + $0x8] sm:$0xff]
        %v286 = vld [vmem:[%s2 + $0x10] sm:$0xff]
        %v287 = vld [vmem:[%s2 + $0x18] sm:$0xff]
        %v288 = vld [vmem:[%s2 + $0x20] sm:$0xff]
        %v289 = vld [vmem:[%s2 + $0x28] sm:$0xff]
        %v290 = vld [vmem:[%s2 + $0x30] sm:$0xff]
        %v291 = vld [vmem:[%s2 + $0x38] sm:$0xff]
        %v292 = vld [vmem:[%s2 + $0x40] sm:$0xff]
        %v293 = vld [vmem:[%s2 + $0x48] sm:$0xff]
        %v294 = vld [vmem:[%s2 + $0x50] sm:$0xff]
        %v295 = vld [vmem:[%s2 + $0x58] sm:$0xff]
        %v296 = vld [vmem:[%s2 + $0x60] sm:$0xff]
        %v297 = vld [vmem:[%s2 + $0x68] sm:$0xff]
        %v298 = vld [vmem:[%s2 + $0x70] sm:$0xff]
        %v299 = vld [vmem:[%s2 + $0x78] sm:$0xff]
        %300 = vmatpush.msra.mxu0 %v299
        %301 = vmatpush.msra.mxu0 %v298
        %302 = vmatpush.msra.mxu0 %v297
        %303 = vmatpush.msra.mxu0 %v296
        %304 = vmatpush.msra.mxu0 %v295
        %305 = vmatpush.msra.mxu0 %v294
        %306 = vmatpush.msra.mxu0 %v293
        %307 = vmatpush.msra.mxu0 %v292
        %308 = vmatpush.msra.mxu0 %v291
        %309 = vmatpush.msra.mxu0 %v290
        %310 = vmatpush.msra.mxu0 %v289
        %311 = vmatpush.msra.mxu0 %v288
        %312 = vmatpush.msra.mxu0 %v287
        %313 = vmatpush.msra.mxu0 %v286
        %314 = vmatpush.msra.mxu0 %v285
        %315 = vmatpush.msra.mxu0 %v284
        %316 = vmatmul.f32.gmra.mxu0 %v247
        %v317 = vpop.f32.mrf.mxu0
        %v318 = vadd.f32 0.0, %v317
        %319 = vdwg.mxu0
        %v320 = vld [vmem:[%s3] sm:$0xff]
        %v321 = vld [vmem:[%s3 + $0x8] sm:$0xff]
        %v322 = vld [vmem:[%s3 + $0x10] sm:$0xff]
        %v323 = vld [vmem:[%s3 + $0x18] sm:$0xff]
        %v324 = vld [vmem:[%s3 + $0x20] sm:$0xff]
        %v325 = vld [vmem:[%s3 + $0x28] sm:$0xff]
        %v326 = vld [vmem:[%s3 + $0x30] sm:$0xff]
        %v327 = vld [vmem:[%s3 + $0x38] sm:$0xff]
        %v328 = vld [vmem:[%s3 + $0x40] sm:$0xff]
        %v329 = vld [vmem:[%s3 + $0x48] sm:$0xff]
        %v330 = vld [vmem:[%s3 + $0x50] sm:$0xff]
        %v331 = vld [vmem:[%s3 + $0x58] sm:$0xff]
        %v332 = vld [vmem:[%s3 + $0x60] sm:$0xff]
        %v333 = vld [vmem:[%s3 + $0x68] sm:$0xff]
        %v334 = vld [vmem:[%s3 + $0x70] sm:$0xff]
        %v335 = vld [vmem:[%s3 + $0x78] sm:$0xff]
        %336 = vmatpush.msra.mxu0 %v335
        %337 = vmatpush.msra.mxu0 %v334
        %338 = vmatpush.msra.mxu0 %v333
        %339 = vmatpush.msra.mxu0 %v332
        %340 = vmatpush.msra.mxu0 %v331
        %341 = vmatpush.msra.mxu0 %v330
        %342 = vmatpush.msra.mxu0 %v329
        %343 = vmatpush.msra.mxu0 %v328
        %344 = vmatpush.msra.mxu0 %v327
        %345 = vmatpush.msra.mxu0 %v326
        %346 = vmatpush.msra.mxu0 %v325
        %347 = vmatpush.msra.mxu0 %v324
        %348 = vmatpush.msra.mxu0 %v323
        %349 = vmatpush.msra.mxu0 %v322
        %350 = vmatpush.msra.mxu0 %v321
        %351 = vmatpush.msra.mxu0 %v320
        %352 = vmatmul.f32.gmra.mxu0 %v247
        %v353 = vpop.f32.mrf.mxu0
        %v354 = vadd.f32 0.0, %v353
        %355 = vdwg.mxu0
        %vm356 = vcmask 523264
        %v358 = vsel %vm356, %v282, 0
        %v361 = vsel %vm356, %v318, 0
        %363 = vmatpush.xpose.msra.mxu0 0.0
        %364 = vmatpush.xpose.msra.mxu0 0.0
        %365 = vmatpush.xpose.msra.mxu0 0.0
        %366 = vmatpush.xpose.msra.mxu0 0.0
        %367 = vmatpush.xpose.msra.mxu0 0.0
        %368 = vmatpush.xpose.msra.mxu0 0.0
        %369 = vmatpush.xpose.msra.mxu0 0.0
        %370 = vmatpush.xpose.msra.mxu0 0.0
        %371 = vmatpush.xpose.msra.mxu0 0.0
        %372 = vmatpush.xpose.msra.mxu0 0.0
        %373 = vmatpush.xpose.msra.mxu0 0.0
        %374 = vmatpush.xpose.msra.mxu0 0.0
        %375 = vmatpush.xpose.msra.mxu0 0.0
        %376 = vmatpush.xpose.msra.mxu0 0.0
        %377 = vmatpush.xpose.msra.mxu0 0.0
        %378 = vmatpush.xpose.msra.mxu0 %v361
        %379 = vmatmul.f32.gmra.mxu0 %v358
        %v380 = vpop.f32.mrf.mxu0
        %v381 = vadd.f32 0.0, %v380
        %382 = vdwg.mxu0
        %v383 = vmul.f32 %v381, 0.125
        %vm384 = vcmask 64512
        %v385 = vsel %vm384, %v383, -inf
        %386 = vmax.xlane.f32.xlu0 %v385
        %v387 = vpop.xlane.xlu0 %386
        %v388 = vsub.f32 %v383, %v387
        %v389 = vmul.f32 %v388, 1.442695
        %v390 = vpow.pop %v389
        %v391 = vsel %vm384, %v390, 0.0
        %392 = vadd.xlane.f32.xlu0 %v391
        %v393 = vpop.xlane.xlu0 %392
        %v394 = vrcp.pop %v393
        %v395 = vmul.f32 %v393, %v394
        %v396 = vsub.f32 1.0, %v395
        %v397 = vmul.f32 %v394, %v396
        %v398 = vadd.f32 %v394, %v397
        %vm399 = vweird.f32 %v393
        %vm400 = vweird.f32 %v394
        %vm401 = vmor %vm399, %vm400
        %v402 = vsel %vm401, %v394, %v398
        %v403 = vand.u32 2147483647, %v393
        %vm404 = vcmp.eq.f32.partialorder %v403, 8.507059e+37
        %v405 = vand.u32 %v393, 2147483648
        %v406 = vor.u32 1.1754944e-38, %v405
        %v407 = vsel %vm404, %v406, %v402
        %v408 = vmul.f32 %v390, %v407
        %v409 = vld [vmem:[%s5] sm:$0xff]
        %v410 = vmul.f32 %v408, %v409
        %v412 = vsel %vm384, %v410, 0
        %414 = vmatpush.msra.mxu0 0.0
        %415 = vmatpush.msra.mxu0 0.0
        %416 = vmatpush.msra.mxu0 0.0
        %417 = vmatpush.msra.mxu0 0.0
        %418 = vmatpush.msra.mxu0 0.0
        %419 = vmatpush.msra.mxu0 0.0
        %420 = vmatpush.msra.mxu0 0.0
        %421 = vmatpush.msra.mxu0 0.0
        %422 = vmatpush.msra.mxu0 0.0
        %423 = vmatpush.msra.mxu0 0.0
        %424 = vmatpush.msra.mxu0 0.0
        %425 = vmatpush.msra.mxu0 0.0
        %426 = vmatpush.msra.mxu0 0.0
        %427 = vmatpush.msra.mxu0 0.0
        %428 = vmatpush.msra.mxu0 0.0
        %429 = vmatpush.msra.mxu0 %v354
        %430 = vmatmul.f32.gmra.mxu0 %v412
        %v431 = vpop.f32.mrf.mxu0
        %v432 = vadd.f32 0.0, %v431
        %433 = vdwg.mxu0
        %v434 = vld [vmem:[%s4] sm:$0xff]
        %v435 = vld [vmem:[%s4 + $0x8] sm:$0xff]
        %v436 = vld [vmem:[%s4 + $0x10] sm:$0xff]
        %v437 = vld [vmem:[%s4 + $0x18] sm:$0xff]
        %v438 = vld [vmem:[%s4 + $0x20] sm:$0xff]
        %v439 = vld [vmem:[%s4 + $0x28] sm:$0xff]
        %v440 = vld [vmem:[%s4 + $0x30] sm:$0xff]
        %v441 = vld [vmem:[%s4 + $0x38] sm:$0xff]
        %s442 = scalar_lea.vmem %s1, 128
        %v443 = vld [vmem:[%s442] sm:$0xff]
        %v444 = vld [vmem:[%s442 + $0x8] sm:$0xff]
        %v445 = vld [vmem:[%s442 + $0x10] sm:$0xff]
        %v446 = vld [vmem:[%s442 + $0x18] sm:$0xff]
        %v447 = vld [vmem:[%s442 + $0x20] sm:$0xff]
        %v448 = vld [vmem:[%s442 + $0x28] sm:$0xff]
        %v449 = vld [vmem:[%s442 + $0x30] sm:$0xff]
        %v450 = vld [vmem:[%s442 + $0x38] sm:$0xff]
        %v451 = vld [vmem:[%s442 + $0x40] sm:$0xff]
        %v452 = vld [vmem:[%s442 + $0x48] sm:$0xff]
        %v453 = vld [vmem:[%s442 + $0x50] sm:$0xff]
        %v454 = vld [vmem:[%s442 + $0x58] sm:$0xff]
        %v455 = vld [vmem:[%s442 + $0x60] sm:$0xff]
        %v456 = vld [vmem:[%s442 + $0x68] sm:$0xff]
        %v457 = vld [vmem:[%s442 + $0x70] sm:$0xff]
        %v458 = vld [vmem:[%s442 + $0x78] sm:$0xff]
        %459 = vmatpush.msra.mxu0 %v458
        %460 = vmatpush.msra.mxu0 %v457
        %461 = vmatpush.msra.mxu0 %v456
        %462 = vmatpush.msra.mxu0 %v455
        %463 = vmatpush.msra.mxu0 %v454
        %464 = vmatpush.msra.mxu0 %v453
        %465 = vmatpush.msra.mxu0 %v452
        %466 = vmatpush.msra.mxu0 %v451
        %467 = vmatpush.msra.mxu0 %v450
        %468 = vmatpush.msra.mxu0 %v449
        %469 = vmatpush.msra.mxu0 %v448
        %470 = vmatpush.msra.mxu0 %v447
        %471 = vmatpush.msra.mxu0 %v446
        %472 = vmatpush.msra.mxu0 %v445
        %473 = vmatpush.msra.mxu0 %v444
        %474 = vmatpush.msra.mxu0 %v443
        %475 = vmatmul.f32.gmra.mxu0 %v247
        %v476 = vpop.f32.mrf.mxu0
        %v477 = vadd.f32 0.0, %v476
        %478 = vdwg.mxu0
        %s479 = scalar_lea.vmem %s2, 128
        %v480 = vld [vmem:[%s479] sm:$0xff]
        %v481 = vld [vmem:[%s479 + $0x8] sm:$0xff]
        %v482 = vld [vmem:[%s479 + $0x10] sm:$0xff]
        %v483 = vld [vmem:[%s479 + $0x18] sm:$0xff]
        %v484 = vld [vmem:[%s479 + $0x20] sm:$0xff]
        %v485 = vld [vmem:[%s479 + $0x28] sm:$0xff]
        %v486 = vld [vmem:[%s479 + $0x30] sm:$0xff]
        %v487 = vld [vmem:[%s479 + $0x38] sm:$0xff]
        %v488 = vld [vmem:[%s479 + $0x40] sm:$0xff]
        %v489 = vld [vmem:[%s479 + $0x48] sm:$0xff]
        %v490 = vld [vmem:[%s479 + $0x50] sm:$0xff]
        %v491 = vld [vmem:[%s479 + $0x58] sm:$0xff]
        %v492 = vld [vmem:[%s479 + $0x60] sm:$0xff]
        %v493 = vld [vmem:[%s479 + $0x68] sm:$0xff]
        %v494 = vld [vmem:[%s479 + $0x70] sm:$0xff]
        %v495 = vld [vmem:[%s479 + $0x78] sm:$0xff]
        %496 = vmatpush.msra.mxu0 %v495
        %497 = vmatpush.msra.mxu0 %v494
        %498 = vmatpush.msra.mxu0 %v493
        %499 = vmatpush.msra.mxu0 %v492
        %500 = vmatpush.msra.mxu0 %v491
        %501 = vmatpush.msra.mxu0 %v490
        %502 = vmatpush.msra.mxu0 %v489
        %503 = vmatpush.msra.mxu0 %v488
        %504 = vmatpush.msra.mxu0 %v487
        %505 = vmatpush.msra.mxu0 %v486
        %506 = vmatpush.msra.mxu0 %v485
        %507 = vmatpush.msra.mxu0 %v484
        %508 = vmatpush.msra.mxu0 %v483
        %509 = vmatpush.msra.mxu0 %v482
        %510 = vmatpush.msra.mxu0 %v481
        %511 = vmatpush.msra.mxu0 %v480
        %512 = vmatmul.f32.gmra.mxu0 %v247
        %v513 = vpop.f32.mrf.mxu0
        %v514 = vadd.f32 0.0, %v513
        %515 = vdwg.mxu0
        %s516 = scalar_lea.vmem %s3, 128
        %v517 = vld [vmem:[%s516] sm:$0xff]
        %v518 = vld [vmem:[%s516 + $0x8] sm:$0xff]
        %v519 = vld [vmem:[%s516 + $0x10] sm:$0xff]
        %v520 = vld [vmem:[%s516 + $0x18] sm:$0xff]
        %v521 = vld [vmem:[%s516 + $0x20] sm:$0xff]
        %v522 = vld [vmem:[%s516 + $0x28] sm:$0xff]
        %v523 = vld [vmem:[%s516 + $0x30] sm:$0xff]
        %v524 = vld [vmem:[%s516 + $0x38] sm:$0xff]
        %v525 = vld [vmem:[%s516 + $0x40] sm:$0xff]
        %v526 = vld [vmem:[%s516 + $0x48] sm:$0xff]
        %v527 = vld [vmem:[%s516 + $0x50] sm:$0xff]
        %v528 = vld [vmem:[%s516 + $0x58] sm:$0xff]
        %v529 = vld [vmem:[%s516 + $0x60] sm:$0xff]
        %v530 = vld [vmem:[%s516 + $0x68] sm:$0xff]
        %v531 = vld [vmem:[%s516 + $0x70] sm:$0xff]
        %v532 = vld [vmem:[%s516 + $0x78] sm:$0xff]
        %533 = vmatpush.msra.mxu0 %v532
        %534 = vmatpush.msra.mxu0 %v531
        %535 = vmatpush.msra.mxu0 %v530
        %536 = vmatpush.msra.mxu0 %v529
        %537 = vmatpush.msra.mxu0 %v528
        %538 = vmatpush.msra.mxu0 %v527
        %539 = vmatpush.msra.mxu0 %v526
        %540 = vmatpush.msra.mxu0 %v525
        %541 = vmatpush.msra.mxu0 %v524
        %542 = vmatpush.msra.mxu0 %v523
        %543 = vmatpush.msra.mxu0 %v522
        %544 = vmatpush.msra.mxu0 %v521
        %545 = vmatpush.msra.mxu0 %v520
        %546 = vmatpush.msra.mxu0 %v519
        %547 = vmatpush.msra.mxu0 %v518
        %548 = vmatpush.msra.mxu0 %v517
        %549 = vmatmul.f32.gmra.mxu0 %v247
        %v550 = vpop.f32.mrf.mxu0
        %v551 = vadd.f32 0.0, %v550
        %552 = vdwg.mxu0
        %v554 = vsel %vm356, %v477, 0
        %v557 = vsel %vm356, %v514, 0
        %559 = vmatpush.xpose.msra.mxu0 0.0
        %560 = vmatpush.xpose.msra.mxu0 0.0
        %561 = vmatpush.xpose.msra.mxu0 0.0
        %562 = vmatpush.xpose.msra.mxu0 0.0
        %563 = vmatpush.xpose.msra.mxu0 0.0
        %564 = vmatpush.xpose.msra.mxu0 0.0
        %565 = vmatpush.xpose.msra.mxu0 0.0
        %566 = vmatpush.xpose.msra.mxu0 0.0
        %567 = vmatpush.xpose.msra.mxu0 0.0
        %568 = vmatpush.xpose.msra.mxu0 0.0
        %569 = vmatpush.xpose.msra.mxu0 0.0
        %570 = vmatpush.xpose.msra.mxu0 0.0
        %571 = vmatpush.xpose.msra.mxu0 0.0
        %572 = vmatpush.xpose.msra.mxu0 0.0
        %573 = vmatpush.xpose.msra.mxu0 0.0
        %574 = vmatpush.xpose.msra.mxu0 %v557
        %575 = vmatmul.f32.gmra.mxu0 %v554
        %v576 = vpop.f32.mrf.mxu0
        %v577 = vadd.f32 0.0, %v576
        %578 = vdwg.mxu0
        %v579 = vmul.f32 %v577, 0.125
        %v580 = vsel %vm384, %v579, -inf
        %581 = vmax.xlane.f32.xlu0 %v580
        %v582 = vpop.xlane.xlu0 %581
        %v583 = vsub.f32 %v579, %v582
        %v584 = vmul.f32 %v583, 1.442695
        %v585 = vpow.pop %v584
        %v586 = vsel %vm384, %v585, 0.0
        %587 = vadd.xlane.f32.xlu0 %v586
        %v588 = vpop.xlane.xlu0 %587
        %v589 = vrcp.pop %v588
        %v590 = vmul.f32 %v588, %v589
        %v591 = vsub.f32 1.0, %v590
        %v592 = vmul.f32 %v589, %v591
        %v593 = vadd.f32 %v589, %v592
        %vm594 = vweird.f32 %v588
        %vm595 = vweird.f32 %v589
        %vm596 = vmor %vm594, %vm595
        %v597 = vsel %vm596, %v589, %v593
        %v598 = vand.u32 2147483647, %v588
        %vm599 = vcmp.eq.f32.partialorder %v598, 8.507059e+37
        %v600 = vand.u32 %v588, 2147483648
        %v601 = vor.u32 1.1754944e-38, %v600
        %v602 = vsel %vm599, %v601, %v597
        %v603 = vmul.f32 %v585, %v602
        %v604 = vmul.f32 %v603, %v409
        %v606 = vsel %vm384, %v604, 0
        %608 = vmatpush.msra.mxu0 0.0
        %609 = vmatpush.msra.mxu0 0.0
        %610 = vmatpush.msra.mxu0 0.0
        %611 = vmatpush.msra.mxu0 0.0
        %612 = vmatpush.msra.mxu0 0.0
        %613 = vmatpush.msra.mxu0 0.0
        %614 = vmatpush.msra.mxu0 0.0
        %615 = vmatpush.msra.mxu0 0.0
        %616 = vmatpush.msra.mxu0 0.0
        %617 = vmatpush.msra.mxu0 0.0
        %618 = vmatpush.msra.mxu0 0.0
        %619 = vmatpush.msra.mxu0 0.0
        %620 = vmatpush.msra.mxu0 0.0
        %621 = vmatpush.msra.mxu0 0.0
        %622 = vmatpush.msra.mxu0 0.0
        %623 = vmatpush.msra.mxu0 %v551
        %624 = vmatmul.f32.gmra.mxu0 %v606
        %v625 = vpop.f32.mrf.mxu0
        %v626 = vadd.f32 0.0, %v625
        %627 = vdwg.mxu0
        %s628 = scalar_lea.vmem %s4, 64
        %v629 = vld [vmem:[%s628] sm:$0xff]
        %v630 = vld [vmem:[%s628 + $0x8] sm:$0xff]
        %v631 = vld [vmem:[%s628 + $0x10] sm:$0xff]
        %v632 = vld [vmem:[%s628 + $0x18] sm:$0xff]
        %v633 = vld [vmem:[%s628 + $0x20] sm:$0xff]
        %v634 = vld [vmem:[%s628 + $0x28] sm:$0xff]
        %v635 = vld [vmem:[%s628 + $0x30] sm:$0xff]
        %v636 = vld [vmem:[%s628 + $0x38] sm:$0xff]
        %v638 = vsel %vm356, %v626, 0
        %640 = vmatpush.msra.mxu0 0.0
        %641 = vmatpush.msra.mxu0 0.0
        %642 = vmatpush.msra.mxu0 0.0
        %643 = vmatpush.msra.mxu0 0.0
        %644 = vmatpush.msra.mxu0 0.0
        %645 = vmatpush.msra.mxu0 0.0
        %646 = vmatpush.msra.mxu0 0.0
        %647 = vmatpush.msra.mxu0 0.0
        %648 = vmatpush.msra.mxu0 %v636
        %649 = vmatpush.msra.mxu0 %v635
        %650 = vmatpush.msra.mxu0 %v634
        %651 = vmatpush.msra.mxu0 %v633
        %652 = vmatpush.msra.mxu0 %v632
        %653 = vmatpush.msra.mxu0 %v631
        %654 = vmatpush.msra.mxu0 %v630
        %655 = vmatpush.msra.mxu0 %v629
        %656 = vmatmul.f32.gmra.mxu0 %v638
        %v657 = vpop.f32.mrf.mxu0
        %v658 = vadd.f32 0.0, %v657
        %659 = vdwg.mxu0
        %v661 = vsel %vm356, %v432, 0
        %663 = vmatpush.msra.mxu0 0.0
        %664 = vmatpush.msra.mxu0 0.0
        %665 = vmatpush.msra.mxu0 0.0
        %666 = vmatpush.msra.mxu0 0.0
        %667 = vmatpush.msra.mxu0 0.0
        %668 = vmatpush.msra.mxu0 0.0
        %669 = vmatpush.msra.mxu0 0.0
        %670 = vmatpush.msra.mxu0 0.0
        %671 = vmatpush.msra.mxu0 %v441
        %672 = vmatpush.msra.mxu0 %v440
        %673 = vmatpush.msra.mxu0 %v439
        %674 = vmatpush.msra.mxu0 %v438
        %675 = vmatpush.msra.mxu0 %v437
        %676 = vmatpush.msra.mxu0 %v436
        %677 = vmatpush.msra.mxu0 %v435
        %678 = vmatpush.msra.mxu0 %v434
        %679 = vmatmul.f32.gmra.mxu0 %v661
        %v680 = vpop.f32.mrf.mxu0
        %v681 = vadd.f32 %v658, %v680
        %682 = vdwg.mxu0
        %s683 = scalar_lea.vmem %s1, 256
        %v684 = vld [vmem:[%s683] sm:$0xff]
        %v685 = vld [vmem:[%s683 + $0x8] sm:$0xff]
        %v686 = vld [vmem:[%s683 + $0x10] sm:$0xff]
        %v687 = vld [vmem:[%s683 + $0x18] sm:$0xff]
        %v688 = vld [vmem:[%s683 + $0x20] sm:$0xff]
        %v689 = vld [vmem:[%s683 + $0x28] sm:$0xff]
        %v690 = vld [vmem:[%s683 + $0x30] sm:$0xff]
        %v691 = vld [vmem:[%s683 + $0x38] sm:$0xff]
        %v692 = vld [vmem:[%s683 + $0x40] sm:$0xff]
        %v693 = vld [vmem:[%s683 + $0x48] sm:$0xff]
        %v694 = vld [vmem:[%s683 + $0x50] sm:$0xff]
        %v695 = vld [vmem:[%s683 + $0x58] sm:$0xff]
        %v696 = vld [vmem:[%s683 + $0x60] sm:$0xff]
        %v697 = vld [vmem:[%s683 + $0x68] sm:$0xff]
        %v698 = vld [vmem:[%s683 + $0x70] sm:$0xff]
        %v699 = vld [vmem:[%s683 + $0x78] sm:$0xff]
        %700 = vmatpush.msra.mxu0 %v699
        %701 = vmatpush.msra.mxu0 %v698
        %702 = vmatpush.msra.mxu0 %v697
        %703 = vmatpush.msra.mxu0 %v696
        %704 = vmatpush.msra.mxu0 %v695
        %705 = vmatpush.msra.mxu0 %v694
        %706 = vmatpush.msra.mxu0 %v693
        %707 = vmatpush.msra.mxu0 %v692
        %708 = vmatpush.msra.mxu0 %v691
        %709 = vmatpush.msra.mxu0 %v690
        %710 = vmatpush.msra.mxu0 %v689
        %711 = vmatpush.msra.mxu0 %v688
        %712 = vmatpush.msra.mxu0 %v687
        %713 = vmatpush.msra.mxu0 %v686
        %714 = vmatpush.msra.mxu0 %v685
        %715 = vmatpush.msra.mxu0 %v684
        %716 = vmatmul.f32.gmra.mxu0 %v247
        %v717 = vpop.f32.mrf.mxu0
        %v718 = vadd.f32 0.0, %v717
        %719 = vdwg.mxu0
        %s720 = scalar_lea.vmem %s2, 256
        %v721 = vld [vmem:[%s720] sm:$0xff]
        %v722 = vld [vmem:[%s720 + $0x8] sm:$0xff]
        %v723 = vld [vmem:[%s720 + $0x10] sm:$0xff]
        %v724 = vld [vmem:[%s720 + $0x18] sm:$0xff]
        %v725 = vld [vmem:[%s720 + $0x20] sm:$0xff]
        %v726 = vld [vmem:[%s720 + $0x28] sm:$0xff]
        %v727 = vld [vmem:[%s720 + $0x30] sm:$0xff]
        %v728 = vld [vmem:[%s720 + $0x38] sm:$0xff]
        %v729 = vld [vmem:[%s720 + $0x40] sm:$0xff]
        %v730 = vld [vmem:[%s720 + $0x48] sm:$0xff]
        %v731 = vld [vmem:[%s720 + $0x50] sm:$0xff]
        %v732 = vld [vmem:[%s720 + $0x58] sm:$0xff]
        %v733 = vld [vmem:[%s720 + $0x60] sm:$0xff]
        %v734 = vld [vmem:[%s720 + $0x68] sm:$0xff]
        %v735 = vld [vmem:[%s720 + $0x70] sm:$0xff]
        %v736 = vld [vmem:[%s720 + $0x78] sm:$0xff]
        %737 = vmatpush.msra.mxu0 %v736
        %738 = vmatpush.msra.mxu0 %v735
        %739 = vmatpush.msra.mxu0 %v734
        %740 = vmatpush.msra.mxu0 %v733
        %741 = vmatpush.msra.mxu0 %v732
        %742 = vmatpush.msra.mxu0 %v731
        %743 = vmatpush.msra.mxu0 %v730
        %744 = vmatpush.msra.mxu0 %v729
        %745 = vmatpush.msra.mxu0 %v728
        %746 = vmatpush.msra.mxu0 %v727
        %747 = vmatpush.msra.mxu0 %v726
        %748 = vmatpush.msra.mxu0 %v725
        %749 = vmatpush.msra.mxu0 %v724
        %750 = vmatpush.msra.mxu0 %v723
        %751 = vmatpush.msra.mxu0 %v722
        %752 = vmatpush.msra.mxu0 %v721
        %753 = vmatmul.f32.gmra.mxu0 %v247
        %v754 = vpop.f32.mrf.mxu0
        %v755 = vadd.f32 0.0, %v754
        %756 = vdwg.mxu0
        %s757 = scalar_lea.vmem %s3, 256
        %v758 = vld [vmem:[%s757] sm:$0xff]
        %v759 = vld [vmem:[%s757 + $0x8] sm:$0xff]
        %v760 = vld [vmem:[%s757 + $0x10] sm:$0xff]
        %v761 = vld [vmem:[%s757 + $0x18] sm:$0xff]
        %v762 = vld [vmem:[%s757 + $0x20] sm:$0xff]
        %v763 = vld [vmem:[%s757 + $0x28] sm:$0xff]
        %v764 = vld [vmem:[%s757 + $0x30] sm:$0xff]
        %v765 = vld [vmem:[%s757 + $0x38] sm:$0xff]
        %v766 = vld [vmem:[%s757 + $0x40] sm:$0xff]
        %v767 = vld [vmem:[%s757 + $0x48] sm:$0xff]
        %v768 = vld [vmem:[%s757 + $0x50] sm:$0xff]
        %v769 = vld [vmem:[%s757 + $0x58] sm:$0xff]
        %v770 = vld [vmem:[%s757 + $0x60] sm:$0xff]
        %v771 = vld [vmem:[%s757 + $0x68] sm:$0xff]
        %v772 = vld [vmem:[%s757 + $0x70] sm:$0xff]
        %v773 = vld [vmem:[%s757 + $0x78] sm:$0xff]
        %774 = vmatpush.msra.mxu0 %v773
        %775 = vmatpush.msra.mxu0 %v772
        %776 = vmatpush.msra.mxu0 %v771
        %777 = vmatpush.msra.mxu0 %v770
        %778 = vmatpush.msra.mxu0 %v769
        %779 = vmatpush.msra.mxu0 %v768
        %780 = vmatpush.msra.mxu0 %v767
        %781 = vmatpush.msra.mxu0 %v766
        %782 = vmatpush.msra.mxu0 %v765
        %783 = vmatpush.msra.mxu0 %v764
        %784 = vmatpush.msra.mxu0 %v763
        %785 = vmatpush.msra.mxu0 %v762
        %786 = vmatpush.msra.mxu0 %v761
        %787 = vmatpush.msra.mxu0 %v760
        %788 = vmatpush.msra.mxu0 %v759
        %789 = vmatpush.msra.mxu0 %v758
        %790 = vmatmul.f32.gmra.mxu0 %v247
        %v791 = vpop.f32.mrf.mxu0
        %v792 = vadd.f32 0.0, %v791
        %793 = vdwg.mxu0
        %v795 = vsel %vm356, %v718, 0
        %v798 = vsel %vm356, %v755, 0
        %800 = vmatpush.xpose.msra.mxu0 0.0
        %801 = vmatpush.xpose.msra.mxu0 0.0
        %802 = vmatpush.xpose.msra.mxu0 0.0
        %803 = vmatpush.xpose.msra.mxu0 0.0
        %804 = vmatpush.xpose.msra.mxu0 0.0
        %805 = vmatpush.xpose.msra.mxu0 0.0
        %806 = vmatpush.xpose.msra.mxu0 0.0
        %807 = vmatpush.xpose.msra.mxu0 0.0
        %808 = vmatpush.xpose.msra.mxu0 0.0
        %809 = vmatpush.xpose.msra.mxu0 0.0
        %810 = vmatpush.xpose.msra.mxu0 0.0
        %811 = vmatpush.xpose.msra.mxu0 0.0
        %812 = vmatpush.xpose.msra.mxu0 0.0
        %813 = vmatpush.xpose.msra.mxu0 0.0
        %814 = vmatpush.xpose.msra.mxu0 0.0
        %815 = vmatpush.xpose.msra.mxu0 %v798
        %816 = vmatmul.f32.gmra.mxu0 %v795
        %v817 = vpop.f32.mrf.mxu0
        %v818 = vadd.f32 0.0, %v817
        %819 = vdwg.mxu0
        %v820 = vmul.f32 %v818, 0.125
        %v821 = vsel %vm384, %v820, -inf
        %822 = vmax.xlane.f32.xlu0 %v821
        %v823 = vpop.xlane.xlu0 %822
        %v824 = vsub.f32 %v820, %v823
        %v825 = vmul.f32 %v824, 1.442695
        %v826 = vpow.pop %v825
        %v827 = vsel %vm384, %v826, 0.0
        %828 = vadd.xlane.f32.xlu0 %v827
        %v829 = vpop.xlane.xlu0 %828
        %v830 = vrcp.pop %v829
        %v831 = vmul.f32 %v829, %v830
        %v832 = vsub.f32 1.0, %v831
        %v833 = vmul.f32 %v830, %v832
        %v834 = vadd.f32 %v830, %v833
        %vm835 = vweird.f32 %v829
        %vm836 = vweird.f32 %v830
        %vm837 = vmor %vm835, %vm836
        %v838 = vsel %vm837, %v830, %v834
        %v839 = vand.u32 2147483647, %v829
        %vm840 = vcmp.eq.f32.partialorder %v839, 8.507059e+37
        %v841 = vand.u32 %v829, 2147483648
        %v842 = vor.u32 1.1754944e-38, %v841
        %v843 = vsel %vm840, %v842, %v838
        %v844 = vmul.f32 %v826, %v843
        %v845 = vmul.f32 %v844, %v409
        %v847 = vsel %vm384, %v845, 0
        %849 = vmatpush.msra.mxu0 0.0
        %850 = vmatpush.msra.mxu0 0.0
        %851 = vmatpush.msra.mxu0 0.0
        %852 = vmatpush.msra.mxu0 0.0
        %853 = vmatpush.msra.mxu0 0.0
        %854 = vmatpush.msra.mxu0 0.0
        %855 = vmatpush.msra.mxu0 0.0
        %856 = vmatpush.msra.mxu0 0.0
        %857 = vmatpush.msra.mxu0 0.0
        %858 = vmatpush.msra.mxu0 0.0
        %859 = vmatpush.msra.mxu0 0.0
        %860 = vmatpush.msra.mxu0 0.0
        %861 = vmatpush.msra.mxu0 0.0
        %862 = vmatpush.msra.mxu0 0.0
        %863 = vmatpush.msra.mxu0 0.0
        %864 = vmatpush.msra.mxu0 %v792
        %865 = vmatmul.f32.gmra.mxu0 %v847
        %v866 = vpop.f32.mrf.mxu0
        %v867 = vadd.f32 0.0, %v866
        %868 = vdwg.mxu0
        %s869 = scalar_lea.vmem %s4, 128
        %v870 = vld [vmem:[%s869] sm:$0xff]
        %v871 = vld [vmem:[%s869 + $0x8] sm:$0xff]
        %v872 = vld [vmem:[%s869 + $0x10] sm:$0xff]
        %v873 = vld [vmem:[%s869 + $0x18] sm:$0xff]
        %v874 = vld [vmem:[%s869 + $0x20] sm:$0xff]
        %v875 = vld [vmem:[%s869 + $0x28] sm:$0xff]
        %v876 = vld [vmem:[%s869 + $0x30] sm:$0xff]
        %v877 = vld [vmem:[%s869 + $0x38] sm:$0xff]
        %v879 = vsel %vm356, %v867, 0
        %881 = vmatpush.msra.mxu0 0.0
        %882 = vmatpush.msra.mxu0 0.0
        %883 = vmatpush.msra.mxu0 0.0
        %884 = vmatpush.msra.mxu0 0.0
        %885 = vmatpush.msra.mxu0 0.0
        %886 = vmatpush.msra.mxu0 0.0
        %887 = vmatpush.msra.mxu0 0.0
        %888 = vmatpush.msra.mxu0 0.0
        %889 = vmatpush.msra.mxu0 %v877
        %890 = vmatpush.msra.mxu0 %v876
        %891 = vmatpush.msra.mxu0 %v875
        %892 = vmatpush.msra.mxu0 %v874
        %893 = vmatpush.msra.mxu0 %v873
        %894 = vmatpush.msra.mxu0 %v872
        %895 = vmatpush.msra.mxu0 %v871
        %896 = vmatpush.msra.mxu0 %v870
        %897 = vmatmul.f32.gmra.mxu0 %v879
        %v898 = vpop.f32.mrf.mxu0
        %v899 = vadd.f32 0.0, %v898
        %900 = vdwg.mxu0
        %v901 = vadd.f32 %v681, %v899
        %s902 = scalar_lea.vmem %s1, 384
        %v903 = vld [vmem:[%s902] sm:$0xff]
        %v904 = vld [vmem:[%s902 + $0x8] sm:$0xff]
        %v905 = vld [vmem:[%s902 + $0x10] sm:$0xff]
        %v906 = vld [vmem:[%s902 + $0x18] sm:$0xff]
        %v907 = vld [vmem:[%s902 + $0x20] sm:$0xff]
        %v908 = vld [vmem:[%s902 + $0x28] sm:$0xff]
        %v909 = vld [vmem:[%s902 + $0x30] sm:$0xff]
        %v910 = vld [vmem:[%s902 + $0x38] sm:$0xff]
        %v911 = vld [vmem:[%s902 + $0x40] sm:$0xff]
        %v912 = vld [vmem:[%s902 + $0x48] sm:$0xff]
        %v913 = vld [vmem:[%s902 + $0x50] sm:$0xff]
        %v914 = vld [vmem:[%s902 + $0x58] sm:$0xff]
        %v915 = vld [vmem:[%s902 + $0x60] sm:$0xff]
        %v916 = vld [vmem:[%s902 + $0x68] sm:$0xff]
        %v917 = vld [vmem:[%s902 + $0x70] sm:$0xff]
        %v918 = vld [vmem:[%s902 + $0x78] sm:$0xff]
        %919 = vmatpush.msra.mxu0 %v918
        %920 = vmatpush.msra.mxu0 %v917
        %921 = vmatpush.msra.mxu0 %v916
        %922 = vmatpush.msra.mxu0 %v915
        %923 = vmatpush.msra.mxu0 %v914
        %924 = vmatpush.msra.mxu0 %v913
        %925 = vmatpush.msra.mxu0 %v912
        %926 = vmatpush.msra.mxu0 %v911
        %927 = vmatpush.msra.mxu0 %v910
        %928 = vmatpush.msra.mxu0 %v909
        %929 = vmatpush.msra.mxu0 %v908
        %930 = vmatpush.msra.mxu0 %v907
        %931 = vmatpush.msra.mxu0 %v906
        %932 = vmatpush.msra.mxu0 %v905
        %933 = vmatpush.msra.mxu0 %v904
        %934 = vmatpush.msra.mxu0 %v903
        %935 = vmatmul.f32.gmra.mxu0 %v247
        %v936 = vpop.f32.mrf.mxu0
        %v937 = vadd.f32 0.0, %v936
        %938 = vdwg.mxu0
        %s939 = scalar_lea.vmem %s2, 384
        %v940 = vld [vmem:[%s939] sm:$0xff]
        %v941 = vld [vmem:[%s939 + $0x8] sm:$0xff]
        %v942 = vld [vmem:[%s939 + $0x10] sm:$0xff]
        %v943 = vld [vmem:[%s939 + $0x18] sm:$0xff]
        %v944 = vld [vmem:[%s939 + $0x20] sm:$0xff]
        %v945 = vld [vmem:[%s939 + $0x28] sm:$0xff]
        %v946 = vld [vmem:[%s939 + $0x30] sm:$0xff]
        %v947 = vld [vmem:[%s939 + $0x38] sm:$0xff]
        %v948 = vld [vmem:[%s939 + $0x40] sm:$0xff]
        %v949 = vld [vmem:[%s939 + $0x48] sm:$0xff]
        %v950 = vld [vmem:[%s939 + $0x50] sm:$0xff]
        %v951 = vld [vmem:[%s939 + $0x58] sm:$0xff]
        %v952 = vld [vmem:[%s939 + $0x60] sm:$0xff]
        %v953 = vld [vmem:[%s939 + $0x68] sm:$0xff]
        %v954 = vld [vmem:[%s939 + $0x70] sm:$0xff]
        %v955 = vld [vmem:[%s939 + $0x78] sm:$0xff]
        %956 = vmatpush.msra.mxu0 %v955
        %957 = vmatpush.msra.mxu0 %v954
        %958 = vmatpush.msra.mxu0 %v953
        %959 = vmatpush.msra.mxu0 %v952
        %960 = vmatpush.msra.mxu0 %v951
        %961 = vmatpush.msra.mxu0 %v950
        %962 = vmatpush.msra.mxu0 %v949
        %963 = vmatpush.msra.mxu0 %v948
        %964 = vmatpush.msra.mxu0 %v947
        %965 = vmatpush.msra.mxu0 %v946
        %966 = vmatpush.msra.mxu0 %v945
        %967 = vmatpush.msra.mxu0 %v944
        %968 = vmatpush.msra.mxu0 %v943
        %969 = vmatpush.msra.mxu0 %v942
        %970 = vmatpush.msra.mxu0 %v941
        %971 = vmatpush.msra.mxu0 %v940
        %972 = vmatmul.f32.gmra.mxu0 %v247
        %v973 = vpop.f32.mrf.mxu0
        %v974 = vadd.f32 0.0, %v973
        %975 = vdwg.mxu0
        %s976 = scalar_lea.vmem %s3, 384
        %v977 = vld [vmem:[%s976] sm:$0xff]
        %v978 = vld [vmem:[%s976 + $0x8] sm:$0xff]
        %v979 = vld [vmem:[%s976 + $0x10] sm:$0xff]
        %v980 = vld [vmem:[%s976 + $0x18] sm:$0xff]
        %v981 = vld [vmem:[%s976 + $0x20] sm:$0xff]
        %v982 = vld [vmem:[%s976 + $0x28] sm:$0xff]
        %v983 = vld [vmem:[%s976 + $0x30] sm:$0xff]
        %v984 = vld [vmem:[%s976 + $0x38] sm:$0xff]
        %v985 = vld [vmem:[%s976 + $0x40] sm:$0xff]
        %v986 = vld [vmem:[%s976 + $0x48] sm:$0xff]
        %v987 = vld [vmem:[%s976 + $0x50] sm:$0xff]
        %v988 = vld [vmem:[%s976 + $0x58] sm:$0xff]
        %v989 = vld [vmem:[%s976 + $0x60] sm:$0xff]
        %v990 = vld [vmem:[%s976 + $0x68] sm:$0xff]
        %v991 = vld [vmem:[%s976 + $0x70] sm:$0xff]
        %v992 = vld [vmem:[%s976 + $0x78] sm:$0xff]
        %993 = vmatpush.msra.mxu0 %v992
        %994 = vmatpush.msra.mxu0 %v991
        %995 = vmatpush.msra.mxu0 %v990
        %996 = vmatpush.msra.mxu0 %v989
        %997 = vmatpush.msra.mxu0 %v988
        %998 = vmatpush.msra.mxu0 %v987
        %999 = vmatpush.msra.mxu0 %v986
        %1000 = vmatpush.msra.mxu0 %v985
        %1001 = vmatpush.msra.mxu0 %v984
        %1002 = vmatpush.msra.mxu0 %v983
        %1003 = vmatpush.msra.mxu0 %v982
        %1004 = vmatpush.msra.mxu0 %v981
        %1005 = vmatpush.msra.mxu0 %v980
        %1006 = vmatpush.msra.mxu0 %v979
        %1007 = vmatpush.msra.mxu0 %v978
        %1008 = vmatpush.msra.mxu0 %v977
        %1009 = vmatmul.f32.gmra.mxu0 %v247
        %v1010 = vpop.f32.mrf.mxu0
        %v1011 = vadd.f32 0.0, %v1010
        %1012 = vdwg.mxu0
        %v1014 = vsel %vm356, %v937, 0
        %v1017 = vsel %vm356, %v974, 0
        %1019 = vmatpush.xpose.msra.mxu0 0.0
        %1020 = vmatpush.xpose.msra.mxu0 0.0
        %1021 = vmatpush.xpose.msra.mxu0 0.0
        %1022 = vmatpush.xpose.msra.mxu0 0.0
        %1023 = vmatpush.xpose.msra.mxu0 0.0
        %1024 = vmatpush.xpose.msra.mxu0 0.0
        %1025 = vmatpush.xpose.msra.mxu0 0.0
        %1026 = vmatpush.xpose.msra.mxu0 0.0
        %1027 = vmatpush.xpose.msra.mxu0 0.0
        %1028 = vmatpush.xpose.msra.mxu0 0.0
        %1029 = vmatpush.xpose.msra.mxu0 0.0
        %1030 = vmatpush.xpose.msra.mxu0 0.0
        %1031 = vmatpush.xpose.msra.mxu0 0.0
        %1032 = vmatpush.xpose.msra.mxu0 0.0
        %1033 = vmatpush.xpose.msra.mxu0 0.0
        %1034 = vmatpush.xpose.msra.mxu0 %v1017
        %1035 = vmatmul.f32.gmra.mxu0 %v1014
        %v1036 = vpop.f32.mrf.mxu0
        %v1037 = vadd.f32 0.0, %v1036
        %1038 = vdwg.mxu0
        %v1039 = vmul.f32 %v1037, 0.125
        %v1040 = vsel %vm384, %v1039, -inf
        %1041 = vmax.xlane.f32.xlu0 %v1040
        %v1042 = vpop.xlane.xlu0 %1041
        %v1043 = vsub.f32 %v1039, %v1042
        %v1044 = vmul.f32 %v1043, 1.442695
        %v1045 = vpow.pop %v1044
        %v1046 = vsel %vm384, %v1045, 0.0
        %1047 = vadd.xlane.f32.xlu0 %v1046
        %v1048 = vpop.xlane.xlu0 %1047
        %v1049 = vrcp.pop %v1048
        %v1050 = vmul.f32 %v1048, %v1049
        %v1051 = vsub.f32 1.0, %v1050
        %v1052 = vmul.f32 %v1049, %v1051
        %v1053 = vadd.f32 %v1049, %v1052
        %vm1054 = vweird.f32 %v1048
        %vm1055 = vweird.f32 %v1049
        %vm1056 = vmor %vm1054, %vm1055
        %v1057 = vsel %vm1056, %v1049, %v1053
        %v1058 = vand.u32 2147483647, %v1048
        %vm1059 = vcmp.eq.f32.partialorder %v1058, 8.507059e+37
        %v1060 = vand.u32 %v1048, 2147483648
        %v1061 = vor.u32 1.1754944e-38, %v1060
        %v1062 = vsel %vm1059, %v1061, %v1057
        %v1063 = vmul.f32 %v1045, %v1062
        %v1064 = vmul.f32 %v1063, %v409
        %v1066 = vsel %vm384, %v1064, 0
        %1068 = vmatpush.msra.mxu0 0.0
        %1069 = vmatpush.msra.mxu0 0.0
        %1070 = vmatpush.msra.mxu0 0.0
        %1071 = vmatpush.msra.mxu0 0.0
        %1072 = vmatpush.msra.mxu0 0.0
        %1073 = vmatpush.msra.mxu0 0.0
        %1074 = vmatpush.msra.mxu0 0.0
        %1075 = vmatpush.msra.mxu0 0.0
        %1076 = vmatpush.msra.mxu0 0.0
        %1077 = vmatpush.msra.mxu0 0.0
        %1078 = vmatpush.msra.mxu0 0.0
        %1079 = vmatpush.msra.mxu0 0.0
        %1080 = vmatpush.msra.mxu0 0.0
        %1081 = vmatpush.msra.mxu0 0.0
        %1082 = vmatpush.msra.mxu0 0.0
        %1083 = vmatpush.msra.mxu0 %v1011
        %1084 = vmatmul.f32.gmra.mxu0 %v1066
        %v1085 = vpop.f32.mrf.mxu0
        %v1086 = vadd.f32 0.0, %v1085
        %1087 = vdwg.mxu0
        %s1088 = scalar_lea.vmem %s4, 192
        %v1089 = vld [vmem:[%s1088] sm:$0xff]
        %v1090 = vld [vmem:[%s1088 + $0x8] sm:$0xff]
        %v1091 = vld [vmem:[%s1088 + $0x10] sm:$0xff]
        %v1092 = vld [vmem:[%s1088 + $0x18] sm:$0xff]
        %v1093 = vld [vmem:[%s1088 + $0x20] sm:$0xff]
        %v1094 = vld [vmem:[%s1088 + $0x28] sm:$0xff]
        %v1095 = vld [vmem:[%s1088 + $0x30] sm:$0xff]
        %v1096 = vld [vmem:[%s1088 + $0x38] sm:$0xff]
        %v1098 = vsel %vm356, %v1086, 0
        %1100 = vmatpush.msra.mxu0 0.0
        %1101 = vmatpush.msra.mxu0 0.0
        %1102 = vmatpush.msra.mxu0 0.0
        %1103 = vmatpush.msra.mxu0 0.0
        %1104 = vmatpush.msra.mxu0 0.0
        %1105 = vmatpush.msra.mxu0 0.0
        %1106 = vmatpush.msra.mxu0 0.0
        %1107 = vmatpush.msra.mxu0 0.0
        %1108 = vmatpush.msra.mxu0 %v1096
        %1109 = vmatpush.msra.mxu0 %v1095
        %1110 = vmatpush.msra.mxu0 %v1094
        %1111 = vmatpush.msra.mxu0 %v1093
        %1112 = vmatpush.msra.mxu0 %v1092
        %1113 = vmatpush.msra.mxu0 %v1091
        %1114 = vmatpush.msra.mxu0 %v1090
        %1115 = vmatpush.msra.mxu0 %v1089
        %1116 = vmatmul.f32.gmra.mxu0 %v1098
        %v1117 = vpop.f32.mrf.mxu0
        %v1118 = vadd.f32 0.0, %v1117
        %1119 = vdwg.mxu0
        %v1120 = vadd.f32 %v901, %v1118
        %s1121 = scalar_lea.vmem %s1, 512
        %v1122 = vld [vmem:[%s1121] sm:$0xff]
        %v1123 = vld [vmem:[%s1121 + $0x8] sm:$0xff]
        %v1124 = vld [vmem:[%s1121 + $0x10] sm:$0xff]
        %v1125 = vld [vmem:[%s1121 + $0x18] sm:$0xff]
        %v1126 = vld [vmem:[%s1121 + $0x20] sm:$0xff]
        %v1127 = vld [vmem:[%s1121 + $0x28] sm:$0xff]
        %v1128 = vld [vmem:[%s1121 + $0x30] sm:$0xff]
        %v1129 = vld [vmem:[%s1121 + $0x38] sm:$0xff]
        %v1130 = vld [vmem:[%s1121 + $0x40] sm:$0xff]
        %v1131 = vld [vmem:[%s1121 + $0x48] sm:$0xff]
        %v1132 = vld [vmem:[%s1121 + $0x50] sm:$0xff]
        %v1133 = vld [vmem:[%s1121 + $0x58] sm:$0xff]
        %v1134 = vld [vmem:[%s1121 + $0x60] sm:$0xff]
        %v1135 = vld [vmem:[%s1121 + $0x68] sm:$0xff]
        %v1136 = vld [vmem:[%s1121 + $0x70] sm:$0xff]
        %v1137 = vld [vmem:[%s1121 + $0x78] sm:$0xff]
        %1138 = vmatpush.msra.mxu0 %v1137
        %1139 = vmatpush.msra.mxu0 %v1136
        %1140 = vmatpush.msra.mxu0 %v1135
        %1141 = vmatpush.msra.mxu0 %v1134
        %1142 = vmatpush.msra.mxu0 %v1133
        %1143 = vmatpush.msra.mxu0 %v1132
        %1144 = vmatpush.msra.mxu0 %v1131
        %1145 = vmatpush.msra.mxu0 %v1130
        %1146 = vmatpush.msra.mxu0 %v1129
        %1147 = vmatpush.msra.mxu0 %v1128
        %1148 = vmatpush.msra.mxu0 %v1127
        %1149 = vmatpush.msra.mxu0 %v1126
        %1150 = vmatpush.msra.mxu0 %v1125
        %1151 = vmatpush.msra.mxu0 %v1124
        %1152 = vmatpush.msra.mxu0 %v1123
        %1153 = vmatpush.msra.mxu0 %v1122
        %1154 = vmatmul.f32.gmra.mxu0 %v247
        %v1155 = vpop.f32.mrf.mxu0
        %v1156 = vadd.f32 0.0, %v1155
        %1157 = vdwg.mxu0
        %s1158 = scalar_lea.vmem %s2, 512
        %v1159 = vld [vmem:[%s1158] sm:$0xff]
        %v1160 = vld [vmem:[%s1158 + $0x8] sm:$0xff]
        %v1161 = vld [vmem:[%s1158 + $0x10] sm:$0xff]
        %v1162 = vld [vmem:[%s1158 + $0x18] sm:$0xff]
        %v1163 = vld [vmem:[%s1158 + $0x20] sm:$0xff]
        %v1164 = vld [vmem:[%s1158 + $0x28] sm:$0xff]
        %v1165 = vld [vmem:[%s1158 + $0x30] sm:$0xff]
        %v1166 = vld [vmem:[%s1158 + $0x38] sm:$0xff]
        %v1167 = vld [vmem:[%s1158 + $0x40] sm:$0xff]
        %v1168 = vld [vmem:[%s1158 + $0x48] sm:$0xff]
        %v1169 = vld [vmem:[%s1158 + $0x50] sm:$0xff]
        %v1170 = vld [vmem:[%s1158 + $0x58] sm:$0xff]
        %v1171 = vld [vmem:[%s1158 + $0x60] sm:$0xff]
        %v1172 = vld [vmem:[%s1158 + $0x68] sm:$0xff]
        %v1173 = vld [vmem:[%s1158 + $0x70] sm:$0xff]
        %v1174 = vld [vmem:[%s1158 + $0x78] sm:$0xff]
        %1175 = vmatpush.msra.mxu0 %v1174
        %1176 = vmatpush.msra.mxu0 %v1173
        %1177 = vmatpush.msra.mxu0 %v1172
        %1178 = vmatpush.msra.mxu0 %v1171
        %1179 = vmatpush.msra.mxu0 %v1170
        %1180 = vmatpush.msra.mxu0 %v1169
        %1181 = vmatpush.msra.mxu0 %v1168
        %1182 = vmatpush.msra.mxu0 %v1167
        %1183 = vmatpush.msra.mxu0 %v1166
        %1184 = vmatpush.msra.mxu0 %v1165
        %1185 = vmatpush.msra.mxu0 %v1164
        %1186 = vmatpush.msra.mxu0 %v1163
        %1187 = vmatpush.msra.mxu0 %v1162
        %1188 = vmatpush.msra.mxu0 %v1161
        %1189 = vmatpush.msra.mxu0 %v1160
        %1190 = vmatpush.msra.mxu0 %v1159
        %1191 = vmatmul.f32.gmra.mxu0 %v247
        %v1192 = vpop.f32.mrf.mxu0
        %v1193 = vadd.f32 0.0, %v1192
        %1194 = vdwg.mxu0
        %s1195 = scalar_lea.vmem %s3, 512
        %v1196 = vld [vmem:[%s1195] sm:$0xff]
        %v1197 = vld [vmem:[%s1195 + $0x8] sm:$0xff]
        %v1198 = vld [vmem:[%s1195 + $0x10] sm:$0xff]
        %v1199 = vld [vmem:[%s1195 + $0x18] sm:$0xff]
        %v1200 = vld [vmem:[%s1195 + $0x20] sm:$0xff]
        %v1201 = vld [vmem:[%s1195 + $0x28] sm:$0xff]
        %v1202 = vld [vmem:[%s1195 + $0x30] sm:$0xff]
        %v1203 = vld [vmem:[%s1195 + $0x38] sm:$0xff]
        %v1204 = vld [vmem:[%s1195 + $0x40] sm:$0xff]
        %v1205 = vld [vmem:[%s1195 + $0x48] sm:$0xff]
        %v1206 = vld [vmem:[%s1195 + $0x50] sm:$0xff]
        %v1207 = vld [vmem:[%s1195 + $0x58] sm:$0xff]
        %v1208 = vld [vmem:[%s1195 + $0x60] sm:$0xff]
        %v1209 = vld [vmem:[%s1195 + $0x68] sm:$0xff]
        %v1210 = vld [vmem:[%s1195 + $0x70] sm:$0xff]
        %v1211 = vld [vmem:[%s1195 + $0x78] sm:$0xff]
        %1212 = vmatpush.msra.mxu0 %v1211
        %1213 = vmatpush.msra.mxu0 %v1210
        %1214 = vmatpush.msra.mxu0 %v1209
        %1215 = vmatpush.msra.mxu0 %v1208
        %1216 = vmatpush.msra.mxu0 %v1207
        %1217 = vmatpush.msra.mxu0 %v1206
        %1218 = vmatpush.msra.mxu0 %v1205
        %1219 = vmatpush.msra.mxu0 %v1204
        %1220 = vmatpush.msra.mxu0 %v1203
        %1221 = vmatpush.msra.mxu0 %v1202
        %1222 = vmatpush.msra.mxu0 %v1201
        %1223 = vmatpush.msra.mxu0 %v1200
        %1224 = vmatpush.msra.mxu0 %v1199
        %1225 = vmatpush.msra.mxu0 %v1198
        %1226 = vmatpush.msra.mxu0 %v1197
        %1227 = vmatpush.msra.mxu0 %v1196
        %1228 = vmatmul.f32.gmra.mxu0 %v247
        %v1229 = vpop.f32.mrf.mxu0
        %v1230 = vadd.f32 0.0, %v1229
        %1231 = vdwg.mxu0
        %v1233 = vsel %vm356, %v1156, 0
        %v1236 = vsel %vm356, %v1193, 0
        %1238 = vmatpush.xpose.msra.mxu0 0.0
        %1239 = vmatpush.xpose.msra.mxu0 0.0
        %1240 = vmatpush.xpose.msra.mxu0 0.0
        %1241 = vmatpush.xpose.msra.mxu0 0.0
        %1242 = vmatpush.xpose.msra.mxu0 0.0
        %1243 = vmatpush.xpose.msra.mxu0 0.0
        %1244 = vmatpush.xpose.msra.mxu0 0.0
        %1245 = vmatpush.xpose.msra.mxu0 0.0
        %1246 = vmatpush.xpose.msra.mxu0 0.0
        %1247 = vmatpush.xpose.msra.mxu0 0.0
        %1248 = vmatpush.xpose.msra.mxu0 0.0
        %1249 = vmatpush.xpose.msra.mxu0 0.0
        %1250 = vmatpush.xpose.msra.mxu0 0.0
        %1251 = vmatpush.xpose.msra.mxu0 0.0
        %1252 = vmatpush.xpose.msra.mxu0 0.0
        %1253 = vmatpush.xpose.msra.mxu0 %v1236
        %1254 = vmatmul.f32.gmra.mxu0 %v1233
        %v1255 = vpop.f32.mrf.mxu0
        %v1256 = vadd.f32 0.0, %v1255
        %1257 = vdwg.mxu0
        %v1258 = vmul.f32 %v1256, 0.125
        %v1259 = vsel %vm384, %v1258, -inf
        %1260 = vmax.xlane.f32.xlu0 %v1259
        %v1261 = vpop.xlane.xlu0 %1260
        %v1262 = vsub.f32 %v1258, %v1261
        %v1263 = vmul.f32 %v1262, 1.442695
        %v1264 = vpow.pop %v1263
        %v1265 = vsel %vm384, %v1264, 0.0
        %1266 = vadd.xlane.f32.xlu0 %v1265
        %v1267 = vpop.xlane.xlu0 %1266
        %v1268 = vrcp.pop %v1267
        %v1269 = vmul.f32 %v1267, %v1268
        %v1270 = vsub.f32 1.0, %v1269
        %v1271 = vmul.f32 %v1268, %v1270
        %v1272 = vadd.f32 %v1268, %v1271
        %vm1273 = vweird.f32 %v1267
        %vm1274 = vweird.f32 %v1268
        %vm1275 = vmor %vm1273, %vm1274
        %v1276 = vsel %vm1275, %v1268, %v1272
        %v1277 = vand.u32 2147483647, %v1267
        %vm1278 = vcmp.eq.f32.partialorder %v1277, 8.507059e+37
        %v1279 = vand.u32 %v1267, 2147483648
        %v1280 = vor.u32 1.1754944e-38, %v1279
        %v1281 = vsel %vm1278, %v1280, %v1276
        %v1282 = vmul.f32 %v1264, %v1281
        %v1283 = vmul.f32 %v1282, %v409
        %v1285 = vsel %vm384, %v1283, 0
        %1287 = vmatpush.msra.mxu0 0.0
        %1288 = vmatpush.msra.mxu0 0.0
        %1289 = vmatpush.msra.mxu0 0.0
        %1290 = vmatpush.msra.mxu0 0.0
        %1291 = vmatpush.msra.mxu0 0.0
        %1292 = vmatpush.msra.mxu0 0.0
        %1293 = vmatpush.msra.mxu0 0.0
        %1294 = vmatpush.msra.mxu0 0.0
        %1295 = vmatpush.msra.mxu0 0.0
        %1296 = vmatpush.msra.mxu0 0.0
        %1297 = vmatpush.msra.mxu0 0.0
        %1298 = vmatpush.msra.mxu0 0.0
        %1299 = vmatpush.msra.mxu0 0.0
        %1300 = vmatpush.msra.mxu0 0.0
        %1301 = vmatpush.msra.mxu0 0.0
        %1302 = vmatpush.msra.mxu0 %v1230
        %1303 = vmatmul.f32.gmra.mxu0 %v1285
        %v1304 = vpop.f32.mrf.mxu0
        %v1305 = vadd.f32 0.0, %v1304
        %1306 = vdwg.mxu0
        %s1307 = scalar_lea.vmem %s4, 256
        %v1308 = vld [vmem:[%s1307] sm:$0xff]
        %v1309 = vld [vmem:[%s1307 + $0x8] sm:$0xff]
        %v1310 = vld [vmem:[%s1307 + $0x10] sm:$0xff]
        %v1311 = vld [vmem:[%s1307 + $0x18] sm:$0xff]
        %v1312 = vld [vmem:[%s1307 + $0x20] sm:$0xff]
        %v1313 = vld [vmem:[%s1307 + $0x28] sm:$0xff]
        %v1314 = vld [vmem:[%s1307 + $0x30] sm:$0xff]
        %v1315 = vld [vmem:[%s1307 + $0x38] sm:$0xff]
        %v1317 = vsel %vm356, %v1305, 0
        %1319 = vmatpush.msra.mxu0 0.0
        %1320 = vmatpush.msra.mxu0 0.0
        %1321 = vmatpush.msra.mxu0 0.0
        %1322 = vmatpush.msra.mxu0 0.0
        %1323 = vmatpush.msra.mxu0 0.0
        %1324 = vmatpush.msra.mxu0 0.0
        %1325 = vmatpush.msra.mxu0 0.0
        %1326 = vmatpush.msra.mxu0 0.0
        %1327 = vmatpush.msra.mxu0 %v1315
        %1328 = vmatpush.msra.mxu0 %v1314
        %1329 = vmatpush.msra.mxu0 %v1313
        %1330 = vmatpush.msra.mxu0 %v1312
        %1331 = vmatpush.msra.mxu0 %v1311
        %1332 = vmatpush.msra.mxu0 %v1310
        %1333 = vmatpush.msra.mxu0 %v1309
        %1334 = vmatpush.msra.mxu0 %v1308
        %1335 = vmatmul.f32.gmra.mxu0 %v1317
        %v1336 = vpop.f32.mrf.mxu0
        %v1337 = vadd.f32 0.0, %v1336
        %1338 = vdwg.mxu0
        %v1339 = vadd.f32 %v1120, %v1337
        %s1340 = scalar_lea.vmem %s1, 640
        %v1341 = vld [vmem:[%s1340] sm:$0xff]
        %v1342 = vld [vmem:[%s1340 + $0x8] sm:$0xff]
        %v1343 = vld [vmem:[%s1340 + $0x10] sm:$0xff]
        %v1344 = vld [vmem:[%s1340 + $0x18] sm:$0xff]
        %v1345 = vld [vmem:[%s1340 + $0x20] sm:$0xff]
        %v1346 = vld [vmem:[%s1340 + $0x28] sm:$0xff]
        %v1347 = vld [vmem:[%s1340 + $0x30] sm:$0xff]
        %v1348 = vld [vmem:[%s1340 + $0x38] sm:$0xff]
        %v1349 = vld [vmem:[%s1340 + $0x40] sm:$0xff]
        %v1350 = vld [vmem:[%s1340 + $0x48] sm:$0xff]
        %v1351 = vld [vmem:[%s1340 + $0x50] sm:$0xff]
        %v1352 = vld [vmem:[%s1340 + $0x58] sm:$0xff]
        %v1353 = vld [vmem:[%s1340 + $0x60] sm:$0xff]
        %v1354 = vld [vmem:[%s1340 + $0x68] sm:$0xff]
        %v1355 = vld [vmem:[%s1340 + $0x70] sm:$0xff]
        %v1356 = vld [vmem:[%s1340 + $0x78] sm:$0xff]
        %1357 = vmatpush.msra.mxu0 %v1356
        %1358 = vmatpush.msra.mxu0 %v1355
        %1359 = vmatpush.msra.mxu0 %v1354
        %1360 = vmatpush.msra.mxu0 %v1353
        %1361 = vmatpush.msra.mxu0 %v1352
        %1362 = vmatpush.msra.mxu0 %v1351
        %1363 = vmatpush.msra.mxu0 %v1350
        %1364 = vmatpush.msra.mxu0 %v1349
        %1365 = vmatpush.msra.mxu0 %v1348
        %1366 = vmatpush.msra.mxu0 %v1347
        %1367 = vmatpush.msra.mxu0 %v1346
        %1368 = vmatpush.msra.mxu0 %v1345
        %1369 = vmatpush.msra.mxu0 %v1344
        %1370 = vmatpush.msra.mxu0 %v1343
        %1371 = vmatpush.msra.mxu0 %v1342
        %1372 = vmatpush.msra.mxu0 %v1341
        %1373 = vmatmul.f32.gmra.mxu0 %v247
        %v1374 = vpop.f32.mrf.mxu0
        %v1375 = vadd.f32 0.0, %v1374
        %1376 = vdwg.mxu0
        %s1377 = scalar_lea.vmem %s2, 640
        %v1378 = vld [vmem:[%s1377] sm:$0xff]
        %v1379 = vld [vmem:[%s1377 + $0x8] sm:$0xff]
        %v1380 = vld [vmem:[%s1377 + $0x10] sm:$0xff]
        %v1381 = vld [vmem:[%s1377 + $0x18] sm:$0xff]
        %v1382 = vld [vmem:[%s1377 + $0x20] sm:$0xff]
        %v1383 = vld [vmem:[%s1377 + $0x28] sm:$0xff]
        %v1384 = vld [vmem:[%s1377 + $0x30] sm:$0xff]
        %v1385 = vld [vmem:[%s1377 + $0x38] sm:$0xff]
        %v1386 = vld [vmem:[%s1377 + $0x40] sm:$0xff]
        %v1387 = vld [vmem:[%s1377 + $0x48] sm:$0xff]
        %v1388 = vld [vmem:[%s1377 + $0x50] sm:$0xff]
        %v1389 = vld [vmem:[%s1377 + $0x58] sm:$0xff]
        %v1390 = vld [vmem:[%s1377 + $0x60] sm:$0xff]
        %v1391 = vld [vmem:[%s1377 + $0x68] sm:$0xff]
        %v1392 = vld [vmem:[%s1377 + $0x70] sm:$0xff]
        %v1393 = vld [vmem:[%s1377 + $0x78] sm:$0xff]
        %1394 = vmatpush.msra.mxu0 %v1393
        %1395 = vmatpush.msra.mxu0 %v1392
        %1396 = vmatpush.msra.mxu0 %v1391
        %1397 = vmatpush.msra.mxu0 %v1390
        %1398 = vmatpush.msra.mxu0 %v1389
        %1399 = vmatpush.msra.mxu0 %v1388
        %1400 = vmatpush.msra.mxu0 %v1387
        %1401 = vmatpush.msra.mxu0 %v1386
        %1402 = vmatpush.msra.mxu0 %v1385
        %1403 = vmatpush.msra.mxu0 %v1384
        %1404 = vmatpush.msra.mxu0 %v1383
        %1405 = vmatpush.msra.mxu0 %v1382
        %1406 = vmatpush.msra.mxu0 %v1381
        %1407 = vmatpush.msra.mxu0 %v1380
        %1408 = vmatpush.msra.mxu0 %v1379
        %1409 = vmatpush.msra.mxu0 %v1378
        %1410 = vmatmul.f32.gmra.mxu0 %v247
        %v1411 = vpop.f32.mrf.mxu0
        %v1412 = vadd.f32 0.0, %v1411
        %1413 = vdwg.mxu0
        %s1414 = scalar_lea.vmem %s3, 640
        %v1415 = vld [vmem:[%s1414] sm:$0xff]
        %v1416 = vld [vmem:[%s1414 + $0x8] sm:$0xff]
        %v1417 = vld [vmem:[%s1414 + $0x10] sm:$0xff]
        %v1418 = vld [vmem:[%s1414 + $0x18] sm:$0xff]
        %v1419 = vld [vmem:[%s1414 + $0x20] sm:$0xff]
        %v1420 = vld [vmem:[%s1414 + $0x28] sm:$0xff]
        %v1421 = vld [vmem:[%s1414 + $0x30] sm:$0xff]
        %v1422 = vld [vmem:[%s1414 + $0x38] sm:$0xff]
        %v1423 = vld [vmem:[%s1414 + $0x40] sm:$0xff]
        %v1424 = vld [vmem:[%s1414 + $0x48] sm:$0xff]
        %v1425 = vld [vmem:[%s1414 + $0x50] sm:$0xff]
        %v1426 = vld [vmem:[%s1414 + $0x58] sm:$0xff]
        %v1427 = vld [vmem:[%s1414 + $0x60] sm:$0xff]
        %v1428 = vld [vmem:[%s1414 + $0x68] sm:$0xff]
        %v1429 = vld [vmem:[%s1414 + $0x70] sm:$0xff]
        %v1430 = vld [vmem:[%s1414 + $0x78] sm:$0xff]
        %1431 = vmatpush.msra.mxu0 %v1430
        %1432 = vmatpush.msra.mxu0 %v1429
        %1433 = vmatpush.msra.mxu0 %v1428
        %1434 = vmatpush.msra.mxu0 %v1427
        %1435 = vmatpush.msra.mxu0 %v1426
        %1436 = vmatpush.msra.mxu0 %v1425
        %1437 = vmatpush.msra.mxu0 %v1424
        %1438 = vmatpush.msra.mxu0 %v1423
        %1439 = vmatpush.msra.mxu0 %v1422
        %1440 = vmatpush.msra.mxu0 %v1421
        %1441 = vmatpush.msra.mxu0 %v1420
        %1442 = vmatpush.msra.mxu0 %v1419
        %1443 = vmatpush.msra.mxu0 %v1418
        %1444 = vmatpush.msra.mxu0 %v1417
        %1445 = vmatpush.msra.mxu0 %v1416
        %1446 = vmatpush.msra.mxu0 %v1415
        %1447 = vmatmul.f32.gmra.mxu0 %v247
        %v1448 = vpop.f32.mrf.mxu0
        %v1449 = vadd.f32 0.0, %v1448
        %1450 = vdwg.mxu0
        %v1452 = vsel %vm356, %v1375, 0
        %v1455 = vsel %vm356, %v1412, 0
        %1457 = vmatpush.xpose.msra.mxu0 0.0
        %1458 = vmatpush.xpose.msra.mxu0 0.0
        %1459 = vmatpush.xpose.msra.mxu0 0.0
        %1460 = vmatpush.xpose.msra.mxu0 0.0
        %1461 = vmatpush.xpose.msra.mxu0 0.0
        %1462 = vmatpush.xpose.msra.mxu0 0.0
        %1463 = vmatpush.xpose.msra.mxu0 0.0
        %1464 = vmatpush.xpose.msra.mxu0 0.0
        %1465 = vmatpush.xpose.msra.mxu0 0.0
        %1466 = vmatpush.xpose.msra.mxu0 0.0
        %1467 = vmatpush.xpose.msra.mxu0 0.0
        %1468 = vmatpush.xpose.msra.mxu0 0.0
        %1469 = vmatpush.xpose.msra.mxu0 0.0
        %1470 = vmatpush.xpose.msra.mxu0 0.0
        %1471 = vmatpush.xpose.msra.mxu0 0.0
        %1472 = vmatpush.xpose.msra.mxu0 %v1455
        %1473 = vmatmul.f32.gmra.mxu0 %v1452
        %v1474 = vpop.f32.mrf.mxu0
        %v1475 = vadd.f32 0.0, %v1474
        %1476 = vdwg.mxu0
        %v1477 = vmul.f32 %v1475, 0.125
        %v1478 = vsel %vm384, %v1477, -inf
        %1479 = vmax.xlane.f32.xlu0 %v1478
        %v1480 = vpop.xlane.xlu0 %1479
        %v1481 = vsub.f32 %v1477, %v1480
        %v1482 = vmul.f32 %v1481, 1.442695
        %v1483 = vpow.pop %v1482
        %v1484 = vsel %vm384, %v1483, 0.0
        %1485 = vadd.xlane.f32.xlu0 %v1484
        %v1486 = vpop.xlane.xlu0 %1485
        %v1487 = vrcp.pop %v1486
        %v1488 = vmul.f32 %v1486, %v1487
        %v1489 = vsub.f32 1.0, %v1488
        %v1490 = vmul.f32 %v1487, %v1489
        %v1491 = vadd.f32 %v1487, %v1490
        %vm1492 = vweird.f32 %v1486
        %vm1493 = vweird.f32 %v1487
        %vm1494 = vmor %vm1492, %vm1493
        %v1495 = vsel %vm1494, %v1487, %v1491
        %v1496 = vand.u32 2147483647, %v1486
        %vm1497 = vcmp.eq.f32.partialorder %v1496, 8.507059e+37
        %v1498 = vand.u32 %v1486, 2147483648
        %v1499 = vor.u32 1.1754944e-38, %v1498
        %v1500 = vsel %vm1497, %v1499, %v1495
        %v1501 = vmul.f32 %v1483, %v1500
        %v1502 = vmul.f32 %v1501, %v409
        %v1504 = vsel %vm384, %v1502, 0
        %1506 = vmatpush.msra.mxu0 0.0
        %1507 = vmatpush.msra.mxu0 0.0
        %1508 = vmatpush.msra.mxu0 0.0
        %1509 = vmatpush.msra.mxu0 0.0
        %1510 = vmatpush.msra.mxu0 0.0
        %1511 = vmatpush.msra.mxu0 0.0
        %1512 = vmatpush.msra.mxu0 0.0
        %1513 = vmatpush.msra.mxu0 0.0
        %1514 = vmatpush.msra.mxu0 0.0
        %1515 = vmatpush.msra.mxu0 0.0
        %1516 = vmatpush.msra.mxu0 0.0
        %1517 = vmatpush.msra.mxu0 0.0
        %1518 = vmatpush.msra.mxu0 0.0
        %1519 = vmatpush.msra.mxu0 0.0
        %1520 = vmatpush.msra.mxu0 0.0
        %1521 = vmatpush.msra.mxu0 %v1449
        %1522 = vmatmul.f32.gmra.mxu0 %v1504
        %v1523 = vpop.f32.mrf.mxu0
        %v1524 = vadd.f32 0.0, %v1523
        %1525 = vdwg.mxu0
        %s1526 = scalar_lea.vmem %s4, 320
        %v1527 = vld [vmem:[%s1526] sm:$0xff]
        %v1528 = vld [vmem:[%s1526 + $0x8] sm:$0xff]
        %v1529 = vld [vmem:[%s1526 + $0x10] sm:$0xff]
        %v1530 = vld [vmem:[%s1526 + $0x18] sm:$0xff]
        %v1531 = vld [vmem:[%s1526 + $0x20] sm:$0xff]
        %v1532 = vld [vmem:[%s1526 + $0x28] sm:$0xff]
        %v1533 = vld [vmem:[%s1526 + $0x30] sm:$0xff]
        %v1534 = vld [vmem:[%s1526 + $0x38] sm:$0xff]
        %v1536 = vsel %vm356, %v1524, 0
        %1538 = vmatpush.msra.mxu0 0.0
        %1539 = vmatpush.msra.mxu0 0.0
        %1540 = vmatpush.msra.mxu0 0.0
        %1541 = vmatpush.msra.mxu0 0.0
        %1542 = vmatpush.msra.mxu0 0.0
        %1543 = vmatpush.msra.mxu0 0.0
        %1544 = vmatpush.msra.mxu0 0.0
        %1545 = vmatpush.msra.mxu0 0.0
        %1546 = vmatpush.msra.mxu0 %v1534
        %1547 = vmatpush.msra.mxu0 %v1533
        %1548 = vmatpush.msra.mxu0 %v1532
        %1549 = vmatpush.msra.mxu0 %v1531
        %1550 = vmatpush.msra.mxu0 %v1530
        %1551 = vmatpush.msra.mxu0 %v1529
        %1552 = vmatpush.msra.mxu0 %v1528
        %1553 = vmatpush.msra.mxu0 %v1527
        %1554 = vmatmul.f32.gmra.mxu0 %v1536
        %v1555 = vpop.f32.mrf.mxu0
        %v1556 = vadd.f32 0.0, %v1555
        %1557 = vdwg.mxu0
        %v1558 = vadd.f32 %v1339, %v1556
        %s1559 = scalar_lea.vmem %s1, 768
        %v1560 = vld [vmem:[%s1559] sm:$0xff]
        %v1561 = vld [vmem:[%s1559 + $0x8] sm:$0xff]
        %v1562 = vld [vmem:[%s1559 + $0x10] sm:$0xff]
        %v1563 = vld [vmem:[%s1559 + $0x18] sm:$0xff]
        %v1564 = vld [vmem:[%s1559 + $0x20] sm:$0xff]
        %v1565 = vld [vmem:[%s1559 + $0x28] sm:$0xff]
        %v1566 = vld [vmem:[%s1559 + $0x30] sm:$0xff]
        %v1567 = vld [vmem:[%s1559 + $0x38] sm:$0xff]
        %v1568 = vld [vmem:[%s1559 + $0x40] sm:$0xff]
        %v1569 = vld [vmem:[%s1559 + $0x48] sm:$0xff]
        %v1570 = vld [vmem:[%s1559 + $0x50] sm:$0xff]
        %v1571 = vld [vmem:[%s1559 + $0x58] sm:$0xff]
        %v1572 = vld [vmem:[%s1559 + $0x60] sm:$0xff]
        %v1573 = vld [vmem:[%s1559 + $0x68] sm:$0xff]
        %v1574 = vld [vmem:[%s1559 + $0x70] sm:$0xff]
        %v1575 = vld [vmem:[%s1559 + $0x78] sm:$0xff]
        %1576 = vmatpush.msra.mxu0 %v1575
        %1577 = vmatpush.msra.mxu0 %v1574
        %1578 = vmatpush.msra.mxu0 %v1573
        %1579 = vmatpush.msra.mxu0 %v1572
        %1580 = vmatpush.msra.mxu0 %v1571
        %1581 = vmatpush.msra.mxu0 %v1570
        %1582 = vmatpush.msra.mxu0 %v1569
        %1583 = vmatpush.msra.mxu0 %v1568
        %1584 = vmatpush.msra.mxu0 %v1567
        %1585 = vmatpush.msra.mxu0 %v1566
        %1586 = vmatpush.msra.mxu0 %v1565
        %1587 = vmatpush.msra.mxu0 %v1564
        %1588 = vmatpush.msra.mxu0 %v1563
        %1589 = vmatpush.msra.mxu0 %v1562
        %1590 = vmatpush.msra.mxu0 %v1561
        %1591 = vmatpush.msra.mxu0 %v1560
        %1592 = vmatmul.f32.gmra.mxu0 %v247
        %v1593 = vpop.f32.mrf.mxu0
        %v1594 = vadd.f32 0.0, %v1593
        %1595 = vdwg.mxu0
        %s1596 = scalar_lea.vmem %s2, 768
        %v1597 = vld [vmem:[%s1596] sm:$0xff]
        %v1598 = vld [vmem:[%s1596 + $0x8] sm:$0xff]
        %v1599 = vld [vmem:[%s1596 + $0x10] sm:$0xff]
        %v1600 = vld [vmem:[%s1596 + $0x18] sm:$0xff]
        %v1601 = vld [vmem:[%s1596 + $0x20] sm:$0xff]
        %v1602 = vld [vmem:[%s1596 + $0x28] sm:$0xff]
        %v1603 = vld [vmem:[%s1596 + $0x30] sm:$0xff]
        %v1604 = vld [vmem:[%s1596 + $0x38] sm:$0xff]
        %v1605 = vld [vmem:[%s1596 + $0x40] sm:$0xff]
        %v1606 = vld [vmem:[%s1596 + $0x48] sm:$0xff]
        %v1607 = vld [vmem:[%s1596 + $0x50] sm:$0xff]
        %v1608 = vld [vmem:[%s1596 + $0x58] sm:$0xff]
        %v1609 = vld [vmem:[%s1596 + $0x60] sm:$0xff]
        %v1610 = vld [vmem:[%s1596 + $0x68] sm:$0xff]
        %v1611 = vld [vmem:[%s1596 + $0x70] sm:$0xff]
        %v1612 = vld [vmem:[%s1596 + $0x78] sm:$0xff]
        %1613 = vmatpush.msra.mxu0 %v1612
        %1614 = vmatpush.msra.mxu0 %v1611
        %1615 = vmatpush.msra.mxu0 %v1610
        %1616 = vmatpush.msra.mxu0 %v1609
        %1617 = vmatpush.msra.mxu0 %v1608
        %1618 = vmatpush.msra.mxu0 %v1607
        %1619 = vmatpush.msra.mxu0 %v1606
        %1620 = vmatpush.msra.mxu0 %v1605
        %1621 = vmatpush.msra.mxu0 %v1604
        %1622 = vmatpush.msra.mxu0 %v1603
        %1623 = vmatpush.msra.mxu0 %v1602
        %1624 = vmatpush.msra.mxu0 %v1601
        %1625 = vmatpush.msra.mxu0 %v1600
        %1626 = vmatpush.msra.mxu0 %v1599
        %1627 = vmatpush.msra.mxu0 %v1598
        %1628 = vmatpush.msra.mxu0 %v1597
        %1629 = vmatmul.f32.gmra.mxu0 %v247
        %v1630 = vpop.f32.mrf.mxu0
        %v1631 = vadd.f32 0.0, %v1630
        %1632 = vdwg.mxu0
        %s1633 = scalar_lea.vmem %s3, 768
        %v1634 = vld [vmem:[%s1633] sm:$0xff]
        %v1635 = vld [vmem:[%s1633 + $0x8] sm:$0xff]
        %v1636 = vld [vmem:[%s1633 + $0x10] sm:$0xff]
        %v1637 = vld [vmem:[%s1633 + $0x18] sm:$0xff]
        %v1638 = vld [vmem:[%s1633 + $0x20] sm:$0xff]
        %v1639 = vld [vmem:[%s1633 + $0x28] sm:$0xff]
        %v1640 = vld [vmem:[%s1633 + $0x30] sm:$0xff]
        %v1641 = vld [vmem:[%s1633 + $0x38] sm:$0xff]
        %v1642 = vld [vmem:[%s1633 + $0x40] sm:$0xff]
        %v1643 = vld [vmem:[%s1633 + $0x48] sm:$0xff]
        %v1644 = vld [vmem:[%s1633 + $0x50] sm:$0xff]
        %v1645 = vld [vmem:[%s1633 + $0x58] sm:$0xff]
        %v1646 = vld [vmem:[%s1633 + $0x60] sm:$0xff]
        %v1647 = vld [vmem:[%s1633 + $0x68] sm:$0xff]
        %v1648 = vld [vmem:[%s1633 + $0x70] sm:$0xff]
        %v1649 = vld [vmem:[%s1633 + $0x78] sm:$0xff]
        %1650 = vmatpush.msra.mxu0 %v1649
        %1651 = vmatpush.msra.mxu0 %v1648
        %1652 = vmatpush.msra.mxu0 %v1647
        %1653 = vmatpush.msra.mxu0 %v1646
        %1654 = vmatpush.msra.mxu0 %v1645
        %1655 = vmatpush.msra.mxu0 %v1644
        %1656 = vmatpush.msra.mxu0 %v1643
        %1657 = vmatpush.msra.mxu0 %v1642
        %1658 = vmatpush.msra.mxu0 %v1641
        %1659 = vmatpush.msra.mxu0 %v1640
        %1660 = vmatpush.msra.mxu0 %v1639
        %1661 = vmatpush.msra.mxu0 %v1638
        %1662 = vmatpush.msra.mxu0 %v1637
        %1663 = vmatpush.msra.mxu0 %v1636
        %1664 = vmatpush.msra.mxu0 %v1635
        %1665 = vmatpush.msra.mxu0 %v1634
        %1666 = vmatmul.f32.gmra.mxu0 %v247
        %v1667 = vpop.f32.mrf.mxu0
        %v1668 = vadd.f32 0.0, %v1667
        %1669 = vdwg.mxu0
        %v1671 = vsel %vm356, %v1594, 0
        %v1674 = vsel %vm356, %v1631, 0
        %1676 = vmatpush.xpose.msra.mxu0 0.0
        %1677 = vmatpush.xpose.msra.mxu0 0.0
        %1678 = vmatpush.xpose.msra.mxu0 0.0
        %1679 = vmatpush.xpose.msra.mxu0 0.0
        %1680 = vmatpush.xpose.msra.mxu0 0.0
        %1681 = vmatpush.xpose.msra.mxu0 0.0
        %1682 = vmatpush.xpose.msra.mxu0 0.0
        %1683 = vmatpush.xpose.msra.mxu0 0.0
        %1684 = vmatpush.xpose.msra.mxu0 0.0
        %1685 = vmatpush.xpose.msra.mxu0 0.0
        %1686 = vmatpush.xpose.msra.mxu0 0.0
        %1687 = vmatpush.xpose.msra.mxu0 0.0
        %1688 = vmatpush.xpose.msra.mxu0 0.0
        %1689 = vmatpush.xpose.msra.mxu0 0.0
        %1690 = vmatpush.xpose.msra.mxu0 0.0
        %1691 = vmatpush.xpose.msra.mxu0 %v1674
        %1692 = vmatmul.f32.gmra.mxu0 %v1671
        %v1693 = vpop.f32.mrf.mxu0
        %v1694 = vadd.f32 0.0, %v1693
        %1695 = vdwg.mxu0
        %v1696 = vmul.f32 %v1694, 0.125
        %v1697 = vsel %vm384, %v1696, -inf
        %1698 = vmax.xlane.f32.xlu0 %v1697
        %v1699 = vpop.xlane.xlu0 %1698
        %v1700 = vsub.f32 %v1696, %v1699
        %v1701 = vmul.f32 %v1700, 1.442695
        %v1702 = vpow.pop %v1701
        %v1703 = vsel %vm384, %v1702, 0.0
        %1704 = vadd.xlane.f32.xlu0 %v1703
        %v1705 = vpop.xlane.xlu0 %1704
        %v1706 = vrcp.pop %v1705
        %v1707 = vmul.f32 %v1705, %v1706
        %v1708 = vsub.f32 1.0, %v1707
        %v1709 = vmul.f32 %v1706, %v1708
        %v1710 = vadd.f32 %v1706, %v1709
        %vm1711 = vweird.f32 %v1705
        %vm1712 = vweird.f32 %v1706
        %vm1713 = vmor %vm1711, %vm1712
        %v1714 = vsel %vm1713, %v1706, %v1710
        %v1715 = vand.u32 2147483647, %v1705
        %vm1716 = vcmp.eq.f32.partialorder %v1715, 8.507059e+37
        %v1717 = vand.u32 %v1705, 2147483648
        %v1718 = vor.u32 1.1754944e-38, %v1717
        %v1719 = vsel %vm1716, %v1718, %v1714
        %v1720 = vmul.f32 %v1702, %v1719
        %v1721 = vmul.f32 %v1720, %v409
        %v1723 = vsel %vm384, %v1721, 0
        %1725 = vmatpush.msra.mxu0 0.0
        %1726 = vmatpush.msra.mxu0 0.0
        %1727 = vmatpush.msra.mxu0 0.0
        %1728 = vmatpush.msra.mxu0 0.0
        %1729 = vmatpush.msra.mxu0 0.0
        %1730 = vmatpush.msra.mxu0 0.0
        %1731 = vmatpush.msra.mxu0 0.0
        %1732 = vmatpush.msra.mxu0 0.0
        %1733 = vmatpush.msra.mxu0 0.0
        %1734 = vmatpush.msra.mxu0 0.0
        %1735 = vmatpush.msra.mxu0 0.0
        %1736 = vmatpush.msra.mxu0 0.0
        %1737 = vmatpush.msra.mxu0 0.0
        %1738 = vmatpush.msra.mxu0 0.0
        %1739 = vmatpush.msra.mxu0 0.0
        %1740 = vmatpush.msra.mxu0 %v1668
        %1741 = vmatmul.f32.gmra.mxu0 %v1723
        %v1742 = vpop.f32.mrf.mxu0
        %v1743 = vadd.f32 0.0, %v1742
        %1744 = vdwg.mxu0
        %s1745 = scalar_lea.vmem %s4, 384
        %v1746 = vld [vmem:[%s1745] sm:$0xff]
        %v1747 = vld [vmem:[%s1745 + $0x8] sm:$0xff]
        %v1748 = vld [vmem:[%s1745 + $0x10] sm:$0xff]
        %v1749 = vld [vmem:[%s1745 + $0x18] sm:$0xff]
        %v1750 = vld [vmem:[%s1745 + $0x20] sm:$0xff]
        %v1751 = vld [vmem:[%s1745 + $0x28] sm:$0xff]
        %v1752 = vld [vmem:[%s1745 + $0x30] sm:$0xff]
        %v1753 = vld [vmem:[%s1745 + $0x38] sm:$0xff]
        %v1755 = vsel %vm356, %v1743, 0
        %1757 = vmatpush.msra.mxu0 0.0
        %1758 = vmatpush.msra.mxu0 0.0
        %1759 = vmatpush.msra.mxu0 0.0
        %1760 = vmatpush.msra.mxu0 0.0
        %1761 = vmatpush.msra.mxu0 0.0
        %1762 = vmatpush.msra.mxu0 0.0
        %1763 = vmatpush.msra.mxu0 0.0
        %1764 = vmatpush.msra.mxu0 0.0
        %1765 = vmatpush.msra.mxu0 %v1753
        %1766 = vmatpush.msra.mxu0 %v1752
        %1767 = vmatpush.msra.mxu0 %v1751
        %1768 = vmatpush.msra.mxu0 %v1750
        %1769 = vmatpush.msra.mxu0 %v1749
        %1770 = vmatpush.msra.mxu0 %v1748
        %1771 = vmatpush.msra.mxu0 %v1747
        %1772 = vmatpush.msra.mxu0 %v1746
        %1773 = vmatmul.f32.gmra.mxu0 %v1755
        %v1774 = vpop.f32.mrf.mxu0
        %v1775 = vadd.f32 0.0, %v1774
        %1776 = vdwg.mxu0
        %v1777 = vadd.f32 %v1558, %v1775
        %s1778 = scalar_lea.vmem %s1, 896
        %v1779 = vld [vmem:[%s1778] sm:$0xff]
        %v1780 = vld [vmem:[%s1778 + $0x8] sm:$0xff]
        %v1781 = vld [vmem:[%s1778 + $0x10] sm:$0xff]
        %v1782 = vld [vmem:[%s1778 + $0x18] sm:$0xff]
        %v1783 = vld [vmem:[%s1778 + $0x20] sm:$0xff]
        %v1784 = vld [vmem:[%s1778 + $0x28] sm:$0xff]
        %v1785 = vld [vmem:[%s1778 + $0x30] sm:$0xff]
        %v1786 = vld [vmem:[%s1778 + $0x38] sm:$0xff]
        %v1787 = vld [vmem:[%s1778 + $0x40] sm:$0xff]
        %v1788 = vld [vmem:[%s1778 + $0x48] sm:$0xff]
        %v1789 = vld [vmem:[%s1778 + $0x50] sm:$0xff]
        %v1790 = vld [vmem:[%s1778 + $0x58] sm:$0xff]
        %v1791 = vld [vmem:[%s1778 + $0x60] sm:$0xff]
        %v1792 = vld [vmem:[%s1778 + $0x68] sm:$0xff]
        %v1793 = vld [vmem:[%s1778 + $0x70] sm:$0xff]
        %v1794 = vld [vmem:[%s1778 + $0x78] sm:$0xff]
        %1795 = vmatpush.msra.mxu0 %v1794
        %1796 = vmatpush.msra.mxu0 %v1793
        %1797 = vmatpush.msra.mxu0 %v1792
        %1798 = vmatpush.msra.mxu0 %v1791
        %1799 = vmatpush.msra.mxu0 %v1790
        %1800 = vmatpush.msra.mxu0 %v1789
        %1801 = vmatpush.msra.mxu0 %v1788
        %1802 = vmatpush.msra.mxu0 %v1787
        %1803 = vmatpush.msra.mxu0 %v1786
        %1804 = vmatpush.msra.mxu0 %v1785
        %1805 = vmatpush.msra.mxu0 %v1784
        %1806 = vmatpush.msra.mxu0 %v1783
        %1807 = vmatpush.msra.mxu0 %v1782
        %1808 = vmatpush.msra.mxu0 %v1781
        %1809 = vmatpush.msra.mxu0 %v1780
        %1810 = vmatpush.msra.mxu0 %v1779
        %1811 = vmatmul.f32.gmra.mxu0 %v247
        %v1812 = vpop.f32.mrf.mxu0
        %v1813 = vadd.f32 0.0, %v1812
        %1814 = vdwg.mxu0
        %s1815 = scalar_lea.vmem %s2, 896
        %v1816 = vld [vmem:[%s1815] sm:$0xff]
        %v1817 = vld [vmem:[%s1815 + $0x8] sm:$0xff]
        %v1818 = vld [vmem:[%s1815 + $0x10] sm:$0xff]
        %v1819 = vld [vmem:[%s1815 + $0x18] sm:$0xff]
        %v1820 = vld [vmem:[%s1815 + $0x20] sm:$0xff]
        %v1821 = vld [vmem:[%s1815 + $0x28] sm:$0xff]
        %v1822 = vld [vmem:[%s1815 + $0x30] sm:$0xff]
        %v1823 = vld [vmem:[%s1815 + $0x38] sm:$0xff]
        %v1824 = vld [vmem:[%s1815 + $0x40] sm:$0xff]
        %v1825 = vld [vmem:[%s1815 + $0x48] sm:$0xff]
        %v1826 = vld [vmem:[%s1815 + $0x50] sm:$0xff]
        %v1827 = vld [vmem:[%s1815 + $0x58] sm:$0xff]
        %v1828 = vld [vmem:[%s1815 + $0x60] sm:$0xff]
        %v1829 = vld [vmem:[%s1815 + $0x68] sm:$0xff]
        %v1830 = vld [vmem:[%s1815 + $0x70] sm:$0xff]
        %v1831 = vld [vmem:[%s1815 + $0x78] sm:$0xff]
        %1832 = vmatpush.msra.mxu0 %v1831
        %1833 = vmatpush.msra.mxu0 %v1830
        %1834 = vmatpush.msra.mxu0 %v1829
        %1835 = vmatpush.msra.mxu0 %v1828
        %1836 = vmatpush.msra.mxu0 %v1827
        %1837 = vmatpush.msra.mxu0 %v1826
        %1838 = vmatpush.msra.mxu0 %v1825
        %1839 = vmatpush.msra.mxu0 %v1824
        %1840 = vmatpush.msra.mxu0 %v1823
        %1841 = vmatpush.msra.mxu0 %v1822
        %1842 = vmatpush.msra.mxu0 %v1821
        %1843 = vmatpush.msra.mxu0 %v1820
        %1844 = vmatpush.msra.mxu0 %v1819
        %1845 = vmatpush.msra.mxu0 %v1818
        %1846 = vmatpush.msra.mxu0 %v1817
        %1847 = vmatpush.msra.mxu0 %v1816
        %1848 = vmatmul.f32.gmra.mxu0 %v247
        %v1849 = vpop.f32.mrf.mxu0
        %v1850 = vadd.f32 0.0, %v1849
        %1851 = vdwg.mxu0
        %s1852 = scalar_lea.vmem %s3, 896
        %v1853 = vld [vmem:[%s1852] sm:$0xff]
        %v1854 = vld [vmem:[%s1852 + $0x8] sm:$0xff]
        %v1855 = vld [vmem:[%s1852 + $0x10] sm:$0xff]
        %v1856 = vld [vmem:[%s1852 + $0x18] sm:$0xff]
        %v1857 = vld [vmem:[%s1852 + $0x20] sm:$0xff]
        %v1858 = vld [vmem:[%s1852 + $0x28] sm:$0xff]
        %v1859 = vld [vmem:[%s1852 + $0x30] sm:$0xff]
        %v1860 = vld [vmem:[%s1852 + $0x38] sm:$0xff]
        %v1861 = vld [vmem:[%s1852 + $0x40] sm:$0xff]
        %v1862 = vld [vmem:[%s1852 + $0x48] sm:$0xff]
        %v1863 = vld [vmem:[%s1852 + $0x50] sm:$0xff]
        %v1864 = vld [vmem:[%s1852 + $0x58] sm:$0xff]
        %v1865 = vld [vmem:[%s1852 + $0x60] sm:$0xff]
        %v1866 = vld [vmem:[%s1852 + $0x68] sm:$0xff]
        %v1867 = vld [vmem:[%s1852 + $0x70] sm:$0xff]
        %v1868 = vld [vmem:[%s1852 + $0x78] sm:$0xff]
        %1869 = vmatpush.msra.mxu0 %v1868
        %1870 = vmatpush.msra.mxu0 %v1867
        %1871 = vmatpush.msra.mxu0 %v1866
        %1872 = vmatpush.msra.mxu0 %v1865
        %1873 = vmatpush.msra.mxu0 %v1864
        %1874 = vmatpush.msra.mxu0 %v1863
        %1875 = vmatpush.msra.mxu0 %v1862
        %1876 = vmatpush.msra.mxu0 %v1861
        %1877 = vmatpush.msra.mxu0 %v1860
        %1878 = vmatpush.msra.mxu0 %v1859
        %1879 = vmatpush.msra.mxu0 %v1858
        %1880 = vmatpush.msra.mxu0 %v1857
        %1881 = vmatpush.msra.mxu0 %v1856
        %1882 = vmatpush.msra.mxu0 %v1855
        %1883 = vmatpush.msra.mxu0 %v1854
        %1884 = vmatpush.msra.mxu0 %v1853
        %1885 = vmatmul.f32.gmra.mxu0 %v247
        %v1886 = vpop.f32.mrf.mxu0
        %v1887 = vadd.f32 0.0, %v1886
        %1888 = vdwg.mxu0
        %v1890 = vsel %vm356, %v1813, 0
        %v1893 = vsel %vm356, %v1850, 0
        %1895 = vmatpush.xpose.msra.mxu0 0.0
        %1896 = vmatpush.xpose.msra.mxu0 0.0
        %1897 = vmatpush.xpose.msra.mxu0 0.0
        %1898 = vmatpush.xpose.msra.mxu0 0.0
        %1899 = vmatpush.xpose.msra.mxu0 0.0
        %1900 = vmatpush.xpose.msra.mxu0 0.0
        %1901 = vmatpush.xpose.msra.mxu0 0.0
        %1902 = vmatpush.xpose.msra.mxu0 0.0
        %1903 = vmatpush.xpose.msra.mxu0 0.0
        %1904 = vmatpush.xpose.msra.mxu0 0.0
        %1905 = vmatpush.xpose.msra.mxu0 0.0
        %1906 = vmatpush.xpose.msra.mxu0 0.0
        %1907 = vmatpush.xpose.msra.mxu0 0.0
        %1908 = vmatpush.xpose.msra.mxu0 0.0
        %1909 = vmatpush.xpose.msra.mxu0 0.0
        %1910 = vmatpush.xpose.msra.mxu0 %v1893
        %1911 = vmatmul.f32.gmra.mxu0 %v1890
        %v1912 = vpop.f32.mrf.mxu0
        %v1913 = vadd.f32 0.0, %v1912
        %1914 = vdwg.mxu0
        %v1915 = vmul.f32 %v1913, 0.125
        %v1916 = vsel %vm384, %v1915, -inf
        %1917 = vmax.xlane.f32.xlu0 %v1916
        %v1918 = vpop.xlane.xlu0 %1917
        %v1919 = vsub.f32 %v1915, %v1918
        %v1920 = vmul.f32 %v1919, 1.442695
        %v1921 = vpow.pop %v1920
        %v1922 = vsel %vm384, %v1921, 0.0
        %1923 = vadd.xlane.f32.xlu0 %v1922
        %v1924 = vpop.xlane.xlu0 %1923
        %v1925 = vrcp.pop %v1924
        %v1926 = vmul.f32 %v1924, %v1925
        %v1927 = vsub.f32 1.0, %v1926
        %v1928 = vmul.f32 %v1925, %v1927
        %v1929 = vadd.f32 %v1925, %v1928
        %vm1930 = vweird.f32 %v1924
        %vm1931 = vweird.f32 %v1925
        %vm1932 = vmor %vm1930, %vm1931
        %v1933 = vsel %vm1932, %v1925, %v1929
        %v1934 = vand.u32 2147483647, %v1924
        %vm1935 = vcmp.eq.f32.partialorder %v1934, 8.507059e+37
        %v1936 = vand.u32 %v1924, 2147483648
        %v1937 = vor.u32 1.1754944e-38, %v1936
        %v1938 = vsel %vm1935, %v1937, %v1933
        %v1939 = vmul.f32 %v1921, %v1938
        %v1940 = vmul.f32 %v1939, %v409
        %v1942 = vsel %vm384, %v1940, 0
        %1944 = vmatpush.msra.mxu0 0.0
        %1945 = vmatpush.msra.mxu0 0.0
        %1946 = vmatpush.msra.mxu0 0.0
        %1947 = vmatpush.msra.mxu0 0.0
        %1948 = vmatpush.msra.mxu0 0.0
        %1949 = vmatpush.msra.mxu0 0.0
        %1950 = vmatpush.msra.mxu0 0.0
        %1951 = vmatpush.msra.mxu0 0.0
        %1952 = vmatpush.msra.mxu0 0.0
        %1953 = vmatpush.msra.mxu0 0.0
        %1954 = vmatpush.msra.mxu0 0.0
        %1955 = vmatpush.msra.mxu0 0.0
        %1956 = vmatpush.msra.mxu0 0.0
        %1957 = vmatpush.msra.mxu0 0.0
        %1958 = vmatpush.msra.mxu0 0.0
        %1959 = vmatpush.msra.mxu0 %v1887
        %1960 = vmatmul.f32.gmra.mxu0 %v1942
        %v1961 = vpop.f32.mrf.mxu0
        %v1962 = vadd.f32 0.0, %v1961
        %1963 = vdwg.mxu0
        %s1964 = scalar_lea.vmem %s4, 448
        %v1965 = vld [vmem:[%s1964] sm:$0xff]
        %v1966 = vld [vmem:[%s1964 + $0x8] sm:$0xff]
        %v1967 = vld [vmem:[%s1964 + $0x10] sm:$0xff]
        %v1968 = vld [vmem:[%s1964 + $0x18] sm:$0xff]
        %v1969 = vld [vmem:[%s1964 + $0x20] sm:$0xff]
        %v1970 = vld [vmem:[%s1964 + $0x28] sm:$0xff]
        %v1971 = vld [vmem:[%s1964 + $0x30] sm:$0xff]
        %v1972 = vld [vmem:[%s1964 + $0x38] sm:$0xff]
        %v1974 = vsel %vm356, %v1962, 0
        %1976 = vmatpush.msra.mxu0 0.0
        %1977 = vmatpush.msra.mxu0 0.0
        %1978 = vmatpush.msra.mxu0 0.0
        %1979 = vmatpush.msra.mxu0 0.0
        %1980 = vmatpush.msra.mxu0 0.0
        %1981 = vmatpush.msra.mxu0 0.0
        %1982 = vmatpush.msra.mxu0 0.0
        %1983 = vmatpush.msra.mxu0 0.0
        %1984 = vmatpush.msra.mxu0 %v1972
        %1985 = vmatpush.msra.mxu0 %v1971
        %1986 = vmatpush.msra.mxu0 %v1970
        %1987 = vmatpush.msra.mxu0 %v1969
        %1988 = vmatpush.msra.mxu0 %v1968
        %1989 = vmatpush.msra.mxu0 %v1967
        %1990 = vmatpush.msra.mxu0 %v1966
        %1991 = vmatpush.msra.mxu0 %v1965
        %1992 = vmatmul.f32.gmra.mxu0 %v1974
        %v1993 = vpop.f32.mrf.mxu0
        %v1994 = vadd.f32 0.0, %v1993
        %1995 = vdwg.mxu0
        %v1996 = vadd.f32 %v1777, %v1994
        %1997 = vst [vmem:[%s242] sm:$0xff] %v1996
        %s1998 = sand.u32 %s159, 1
        %s1999 = scalar_lea.sflag [#allocation3], %s1998
        %s2000 = sand.u32 %s159, 1
        %s2001 = smul.addr %s2000, 8
        %s2002 = scalar_lea.vmem [#allocation2], %s2001
        // Predicated region
        $region45: #{tpu_custom_call.1} parent=43 // pred_check
          %p2003 = pneg %p169
        $region46: #{tpu_custom_call.1} parent=43 // pred_check_branch
          %2005 = sbr.rel (%p2003) target = $region48
        $region47: #{tpu_custom_call.1} parent=43 // pred_region
          %2007 = vsyncadd %s1999, 0
          %s2008 = smul.addr %s20, 8
          %s2009 = scalar_lea.hbm %s6, %s2008
          %s2011 = sshll.u32 %s2002, 4
          %s2012 = int_to_ptr.vmem [resolvable:$true] %s2011
          %s2013 = sshll.u32 %s2009, 4
          %s2014 = int_to_ptr.hbm [resolvable:$true] %s2013
          %2016 = dma.vmem_to_hbm [thread:$0]  %s2012, 128, %s2014, %s1999
        $region48: #{tpu_custom_call.1} parent=43 // pred_fallthru
          _
      $region44: #{tpu_custom_call.1} parent=5 // pred_fallthru
        _
      %p2017 = scmp.le.s32.totalorder 2, %s15
      // Predicated region
      $region49: #{tpu_custom_call.1} parent=5 // pred_check
        %p2018 = pneg %p2017
      $region50: #{tpu_custom_call.1} parent=5 // pred_check_branch
        %2020 = sbr.rel (%p2018) target = $region52
      $region51: #{tpu_custom_call.1} parent=5 // pred_region
        %s2021 = ssub.s32 %s15, 2
        // Predicated region
        $region53: #{tpu_custom_call.1} parent=51 // pred_check
          %p2022 = pneg %p175
        $region54: #{tpu_custom_call.1} parent=51 // pred_check_branch
          %2024 = sbr.rel (%p2022) target = $region56
        $region55: #{tpu_custom_call.1} parent=51 // pred_region
          %s2025 = sand.u32 %s160, 1
          %s2026 = scalar_lea.sflag [#allocation3], %s2025
          %s2027 = sand.u32 %s160, 1
          %s2028 = smul.addr %s2027, 8
          %s2029 = scalar_lea.vmem [#allocation2], %s2028
          %2031 = dma.done %s2026, 128
        $region56: #{tpu_custom_call.1} parent=51 // pred_fallthru
          _
      $region52: #{tpu_custom_call.1} parent=5 // pred_fallthru
        _
    $region6: #{tpu_custom_call.1} parent=1 // loop_footer
      %s19 = sadd.s32 1, %s15
    $region7: #{tpu_custom_call.1} parent=1 // loop_footer_branch
      %14 = sbr.rel target = $region3
    $region8: #{tpu_custom_call.1} parent=1 // loop_exit
      _
    %2032 = vsyncpa [#allocation3], 1
    %s2033 = scalar_lea.sflag [#allocation3], 1
    %2034 = vsyncpa %s2033, 1

</llo_original>
